<compile_context>
chip_gen: v5e
topology: v5e:2x2
jax: 0.10.0
libtpu: 0.0.40
codegen_flags: <defaults>
</compile_context>

<pallas_src>
import jax
import jax.numpy as jnp
import numpy as np
from jax import lax
from jax.experimental import pallas as pl
from jax.experimental.pallas import tpu as pltpu

K = 9      # conv kernel width (1x9)
PAD = 4    # conv padding along W  (K == 2*PAD + 1)


def _vmem_config():
    """(vmem_limit_bytes, working_budget_bytes), generation-aware."""
    try:
        cap = int(getattr(pltpu.get_tpu_info(), "vmem_capacity_bytes", 64 << 20))
    except Exception:
        cap = 64 << 20                       # conservative (v7x-sized) fallback
    limit = min(cap * 3 // 4, 112 << 20)     # ~48 MiB on v7x, ~96 MiB on v5e/v6e
    return limit, limit // 2


def _pick_tile_h(N, H, W, Cin, Cout, vmem_budget_bytes):
    """Largest legal H-tile fitting the VMEM budget (prefers >=2 grid steps)."""
    # rough VMEM bytes per H-row: double-buffered I/O blocks + in-kernel temps
    row_bytes = 4 * W * (4 * Cin + 10 * Cout + 16)
    max_th = max(1, int(vmem_budget_bytes) // int(row_bytes))
    # legal tiles: divide H and keep the flattened lane dim (th*W) a multiple
    # of 128 (Mosaic (8,128) block rule) unless the tile covers all of H.
    cands = [th for th in range(1, H + 1)
             if H % th == 0 and (th == H or (th * W) % 128 == 0)]
    fitting = [th for th in cands if th <= max_th]
    if not fitting:
        fitting = [min(cands)]               # see TODO(synk) about tiling W
    th = max(fitting)
    # megacore (v7x): prefer >= 2 total grid steps so both TensorCores work
    if N * (H // th) < 2:
        multi = [t for t in fitting if N * (H // t) >= 2]
        if multi:
            th = max(multi)
    return th


def basic_block_pallas(x, w1_f, b1, w2_f, b2, ws_f, bs, *, tile_h=None):
    """Eval-mode BasicBlock forward (BN already folded into conv weights/bias).

    x    : (N, Cin, H, W) f32
    w1_f : (Cout, Cin, 1, K)   conv1 weight (BN1 folded);  b1: (Cout,)
    w2_f : (Cout, Cout, 1, K)  conv2 weight (BN2 folded);  b2: (Cout,)
    ws_f : (Cout, Cin, 1, 1)   1x1 shortcut weight (BN folded); bs: (Cout,)
    returns (N, Cout, H, W) f32
    """
    N, Cin, H, W = x.shape
    Cout = w1_f.shape[0]

    vmem_limit, vmem_budget = _vmem_config()
    TH = tile_h if tile_h is not None else _pick_tile_h(N, H, W, Cin, Cout,
                                                        vmem_budget)
    assert H % TH == 0 and (TH == H or (TH * W) % 128 == 0), \
        "tile_h must divide H and keep tile_h*W a multiple of 128"
    L = TH * W                                # flattened lane extent per tile

    # free contiguous trailing-dim merge; no HBM copy around the pallas_call
    x_flat = x.reshape(N, Cin, H * W)

    # per-tap weight layout (K, Cout, Cin/Cout); biases as (Cout, 1) columns
    w1_k = jnp.transpose(w1_f[:, :, 0, :], (2, 0, 1))          # (K, Cout, Cin)
    w2_k = jnp.transpose(w2_f[:, :, 0, :], (2, 0, 1))          # (K, Cout, Cout)
    ws_m = ws_f[:, :, 0, 0]                                     # (Cout, Cin)
    b1_c = b1.reshape(Cout, 1)
    b2s_c = (b2 + bs).reshape(Cout, 1)

    def kernel(x_ref, w1_ref, b1_ref, w2_ref, ws_ref, b2s_ref, o_ref):
        f32 = jnp.float32
        xv = x_ref[...]                                         # (Cin, L)

        # per-tap row-boundary masks (built in-kernel, no mask input stream)
        wpos = lax.broadcasted_iota(jnp.int32, (1, L), 1) % W
        masks = {}
        for d in range(-PAD, PAD + 1):
            if d == 0:
                continue
            m = (wpos < (W - d)) if d > 0 else (wpos >= (-d))
            masks[d] = m.astype(f32)

        # zero-extended input along lanes: [0_PAD | x | 0_PAD]
        zin = jnp.zeros((Cin, PAD), f32)
        xe = jnp.concatenate([zin, xv, zin], axis=1)            # (Cin, L+2*PAD)

        # ---- conv1 (1x9, BN1 folded): K accumulating MXU dots + ReLU -------
        acc = jnp.dot(w1_ref[PAD], xv, preferred_element_type=f32)
        for k in range(K):
            d = k - PAD
            if d == 0:
                continue
            acc = acc + jnp.dot(w1_ref[k], xe[:, k:k + L] * masks[d],
                                preferred_element_type=f32)
        h = jnp.maximum(acc + b1_ref[...], 0.0)                 # (Cout, L)

        zout = jnp.zeros((Cout, PAD), f32)
        he = jnp.concatenate([zout, h, zout], axis=1)           # (Cout, L+2*PAD)

        # ---- conv2 (1x9, BN2 folded) + 1x1 shortcut (BN folded) + ReLU -----
        acc2 = jnp.dot(ws_ref[...], xv, preferred_element_type=f32)   # shortcut
        acc2 = acc2 + jnp.dot(w2_ref[PAD], h, preferred_element_type=f32)
        for k in range(K):
            d = k - PAD
            if d == 0:
                continue
            acc2 = acc2 + jnp.dot(w2_ref[k], he[:, k:k + L] * masks[d],
                                  preferred_element_type=f32)

        # lane-dense, full-width aligned store
        o_ref[...] = jnp.maximum(acc2 + b2s_ref[...], 0.0).astype(o_ref.dtype)

    flops = 2 * N * H * W * Cout * (K * Cin + K * Cout + Cin)
    bytes_accessed = 4 * (N * Cin * H * W + N * Cout * H * W
                          + K * Cout * (Cin + Cout) + Cout * (Cin + 2))

    out_flat = pl.pallas_call(
        kernel,
        out_shape=jax.ShapeDtypeStruct((N, Cout, H * W), jnp.float32),
        grid_spec=pltpu.PrefetchScalarGridSpec(
            num_scalar_prefetch=0,
            grid=(N, H // TH),
            in_specs=[
                pl.BlockSpec((None, Cin, L), lambda n, t: (n, 0, t)),
                pl.BlockSpec((K, Cout, Cin), lambda n, t: (0, 0, 0)),
                pl.BlockSpec((Cout, 1), lambda n, t: (0, 0)),
                pl.BlockSpec((K, Cout, Cout), lambda n, t: (0, 0, 0)),
                pl.BlockSpec((Cout, Cin), lambda n, t: (0, 0)),
                pl.BlockSpec((Cout, 1), lambda n, t: (0, 0)),
            ],
            out_specs=pl.BlockSpec((None, Cout, L), lambda n, t: (n, 0, t)),
        ),
        compiler_params=pltpu.CompilerParams(
            dimension_semantics=("parallel", "parallel"),
            vmem_limit_bytes=int(vmem_limit)),
        cost_estimate=pl.CostEstimate(flops=flops, transcendentals=0,
                                      bytes_accessed=bytes_accessed),
    )(x_flat, w1_k, b1_c, w2_k, ws_m, b2s_c)

    # free trailing-dim split back to NCHW (no channel/pad slicing needed)
    return out_flat.reshape(N, Cout, H, W)


def _fold_bn(conv_w, gamma, beta, mean, var, eps=1e-5):
    """Fold eval-mode BatchNorm into a bias-free conv. conv_w: (O, I, kh, kw)."""
    scale = gamma / jnp.sqrt(var + eps)
    w = conv_w * scale[:, None, None, None]
    b = beta - mean * scale
    return w, b


def _reference(x, w1_f, b1, w2_f, b2, ws_f, bs):
    """Plain-JAX NCHW reference (eval-mode BN folded, stride=1)."""
    dn = ('NCHW', 'OIHW', 'NCHW')
    y = lax.conv_general_dilated(x, w1_f, (1, 1), ((0, 0), (PAD, PAD)),
                                 dimension_numbers=dn)
    y = jnp.maximum(y + b1[None, :, None, None], 0.0)
    y = lax.conv_general_dilated(y, w2_f, (1, 1), ((0, 0), (PAD, PAD)),
                                 dimension_numbers=dn) + b2[None, :, None, None]
    s = lax.conv_general_dilated(x, ws_f, (1, 1), ((0, 0), (0, 0)),
                                 dimension_numbers=dn) + bs[None, :, None, None]
    return jnp.maximum(y + s, 0.0)


if __name__ == "__main__":
    # Small shapes consistent with BasicBlock(in_planes=4, planes=8, stride=1)
    N, Cin, Cout, H, W = 2, 4, 8, 16, 16

    key = jax.random.PRNGKey(0)
    ks = jax.random.split(key, 8)

    conv1_w = 0.1 * jax.random.normal(ks[0], (Cout, Cin, 1, K), jnp.float32)
    conv2_w = 0.1 * jax.random.normal(ks[1], (Cout, Cout, 1, K), jnp.float32)
    scut_w = 0.1 * jax.random.normal(ks[2], (Cout, Cin, 1, 1), jnp.float32)

    def bn_params(k):
        a, b, c, d = jax.random.split(k, 4)
        gamma = 1.0 + 0.1 * jax.random.normal(a, (Cout,), jnp.float32)
        beta = 0.1 * jax.random.normal(b, (Cout,), jnp.float32)
        mean = 0.1 * jax.random.normal(c, (Cout,), jnp.float32)
        var = 0.5 + jnp.abs(0.1 * jax.random.normal(d, (Cout,), jnp.float32))
        return gamma, beta, mean, var

    w1_f, b1 = _fold_bn(conv1_w, *bn_params(ks[3]))
    w2_f, b2 = _fold_bn(conv2_w, *bn_params(ks[4]))
    ws_f, bs = _fold_bn(scut_w, *bn_params(ks[5]))

    x = jax.random.normal(ks[6], (N, Cin, H, W), jnp.float32)

    ref = jax.block_until_ready(_reference(x, w1_f, b1, w2_f, b2, ws_f, bs))

    # default (auto-picked) tile
    run = jax.jit(lambda *a: basic_block_pallas(*a))
    out = jax.block_until_ready(run(x, w1_f, b1, w2_f, b2, ws_f, bs))
    np.testing.assert_allclose(np.asarray(out), np.asarray(ref),
                               rtol=1e-4, atol=1e-4)

    # also exercise the multi-tile grid path (H split into two 8-row tiles)
    run8 = jax.jit(lambda *a: basic_block_pallas(*a, tile_h=8))
    out8 = jax.block_until_ready(run8(x, w1_f, b1, w2_f, b2, ws_f, bs))
    np.testing.assert_allclose(np.asarray(out8), np.asarray(ref),
                               rtol=1e-4, atol=1e-4)

    print("KERNEL_OK")
</pallas_src>

<mosaic_0001>
module attributes {stable_mosaic.version = 11 : i64} {
  func.func @kernel(%arg0: i32, %arg1: i32, %arg2: memref<1x4x256xf32, #tpu.memory_space<vmem>>, %arg3: memref<9x8x4xf32, #tpu.memory_space<vmem>>, %arg4: memref<8x1xf32, #tpu.memory_space<vmem>>, %arg5: memref<9x8x8xf32, #tpu.memory_space<vmem>>, %arg6: memref<8x4xf32, #tpu.memory_space<vmem>>, %arg7: memref<8x1xf32, #tpu.memory_space<vmem>>, %arg8: memref<1x8x256xf32, #tpu.memory_space<vmem>>) attributes {dimension_semantics = [#tpu.dimension_semantics<parallel>, #tpu.dimension_semantics<parallel>], iteration_bounds = array<i64: 2, 1>, scalar_prefetch = 0 : i64, scratch_operands = 0 : i64, tpu.core_type = #tpu.core_type<tc>, window_params = [{transform_indices = @transform_0, window_bounds = array<i64: 1, 4, 256>}, {pipeline_mode = #tpu.pipeline_mode<synchronous>, transform_indices = @transform_1, window_bounds = array<i64: 9, 8, 4>}, {pipeline_mode = #tpu.pipeline_mode<synchronous>, transform_indices = @transform_2, window_bounds = array<i64: 8, 1>}, {pipeline_mode = #tpu.pipeline_mode<synchronous>, transform_indices = @transform_3, window_bounds = array<i64: 9, 8, 8>}, {pipeline_mode = #tpu.pipeline_mode<synchronous>, transform_indices = @transform_4, window_bounds = array<i64: 8, 4>}, {pipeline_mode = #tpu.pipeline_mode<synchronous>, transform_indices = @transform_5, window_bounds = array<i64: 8, 1>}, {transform_indices = @transform_6, window_bounds = array<i64: 1, 8, 256>}]} {
    %c0 = arith.constant 0 : index
    %c0_0 = arith.constant 0 : index
    %c0_1 = arith.constant 0 : index
    %0 = vector.load %arg2[%c0, %c0_0, %c0_1] : memref<1x4x256xf32, #tpu.memory_space<vmem>>, vector<1x4x256xf32>
    %1 = vector.shape_cast %0 : vector<1x4x256xf32> to vector<4x256xf32>
    %2 = tpu.iota {dimensions = array<i32: 1>} : vector<1x256xi32>
    %c16_i32 = arith.constant 16 : i32
    %c0_i32 = arith.constant 0 : i32
    %3 = arith.cmpi eq, %c16_i32, %c0_i32 : i32
    %c1_i32 = arith.constant 1 : i32
    %4 = arith.select %3, %c1_i32, %c16_i32 : i32
    %5 = vector.broadcast %4 : i32 to vector<1x256xi32>
    %6 = arith.remsi %2, %5 : vector<1x256xi32>
    %c0_i32_2 = arith.constant 0 : i32
    %7 = vector.broadcast %c0_i32_2 : i32 to vector<1x256xi32>
    %8 = arith.cmpi ne, %6, %7 : vector<1x256xi32>
    %c0_i32_3 = arith.constant 0 : i32
    %9 = vector.broadcast %c0_i32_3 : i32 to vector<1x256xi32>
    %10 = arith.cmpi slt, %6, %9 : vector<1x256xi32>
    %c0_i32_4 = arith.constant 0 : i32
    %11 = arith.cmpi slt, %4, %c0_i32_4 : i32
    %12 = vector.broadcast %11 : i1 to vector<1x256xi1>
    %13 = vector.broadcast %12 : vector<1x256xi1> to vector<1x256xi1>
    %14 = arith.xori %10, %13 : vector<1x256xi1>
    %15 = arith.andi %14, %8 : vector<1x256xi1>
    %16 = vector.broadcast %4 : i32 to vector<1x256xi32>
    %17 = arith.addi %6, %16 : vector<1x256xi32>
    %18 = arith.select %15, %17, %6 : vector<1x256xi1>, vector<1x256xi32>
    %c4_i32 = arith.constant 4 : i32
    %19 = vector.broadcast %c4_i32 : i32 to vector<1x256xi32>
    %20 = arith.cmpi sge, %18, %19 : vector<1x256xi32>
    %21 = arith.extui %20 : vector<1x256xi1> to vector<1x256xi32>
    %22 = arith.sitofp %21 : vector<1x256xi32> to vector<1x256xf32>
    %c3_i32 = arith.constant 3 : i32
    %23 = vector.broadcast %c3_i32 : i32 to vector<1x256xi32>
    %24 = arith.cmpi sge, %18, %23 : vector<1x256xi32>
    %25 = arith.extui %24 : vector<1x256xi1> to vector<1x256xi32>
    %26 = arith.sitofp %25 : vector<1x256xi32> to vector<1x256xf32>
    %c2_i32 = arith.constant 2 : i32
    %27 = vector.broadcast %c2_i32 : i32 to vector<1x256xi32>
    %28 = arith.cmpi sge, %18, %27 : vector<1x256xi32>
    %29 = arith.extui %28 : vector<1x256xi1> to vector<1x256xi32>
    %30 = arith.sitofp %29 : vector<1x256xi32> to vector<1x256xf32>
    %c1_i32_5 = arith.constant 1 : i32
    %31 = vector.broadcast %c1_i32_5 : i32 to vector<1x256xi32>
    %32 = arith.cmpi sge, %18, %31 : vector<1x256xi32>
    %33 = arith.extui %32 : vector<1x256xi1> to vector<1x256xi32>
    %34 = arith.sitofp %33 : vector<1x256xi32> to vector<1x256xf32>
    %c15_i32 = arith.constant 15 : i32
    %35 = vector.broadcast %c15_i32 : i32 to vector<1x256xi32>
    %36 = arith.cmpi slt, %18, %35 : vector<1x256xi32>
    %37 = arith.extui %36 : vector<1x256xi1> to vector<1x256xi32>
    %38 = arith.sitofp %37 : vector<1x256xi32> to vector<1x256xf32>
    %c14_i32 = arith.constant 14 : i32
    %39 = vector.broadcast %c14_i32 : i32 to vector<1x256xi32>
    %40 = arith.cmpi slt, %18, %39 : vector<1x256xi32>
    %41 = arith.extui %40 : vector<1x256xi1> to vector<1x256xi32>
    %42 = arith.sitofp %41 : vector<1x256xi32> to vector<1x256xf32>
    %c13_i32 = arith.constant 13 : i32
    %43 = vector.broadcast %c13_i32 : i32 to vector<1x256xi32>
    %44 = arith.cmpi slt, %18, %43 : vector<1x256xi32>
    %45 = arith.extui %44 : vector<1x256xi1> to vector<1x256xi32>
    %46 = arith.sitofp %45 : vector<1x256xi32> to vector<1x256xf32>
    %c12_i32 = arith.constant 12 : i32
    %47 = vector.broadcast %c12_i32 : i32 to vector<1x256xi32>
    %48 = arith.cmpi slt, %18, %47 : vector<1x256xi32>
    %49 = arith.extui %48 : vector<1x256xi1> to vector<1x256xi32>
    %50 = arith.sitofp %49 : vector<1x256xi32> to vector<1x256xf32>
    %cst = arith.constant 0.000000e+00 : f32
    %51 = vector.broadcast %cst : f32 to vector<4x4xf32>
    %52 = tpu.concatenate %51, %1, %51 in 1 : vector<4x4xf32>, vector<4x256xf32>, vector<4x4xf32> -> vector<4x264xf32>
    %c4 = arith.constant 4 : index
    %c0_6 = arith.constant 0 : index
    %c0_7 = arith.constant 0 : index
    %53 = vector.load %arg3[%c4, %c0_6, %c0_7] : memref<9x8x4xf32, #tpu.memory_space<vmem>>, vector<1x8x4xf32>
    %54 = vector.shape_cast %53 : vector<1x8x4xf32> to vector<8x4xf32>
    %cst_8 = arith.constant dense<0.000000e+00> : vector<8x256xf32>
    %55 = tpu.matmul %54, %1, %cst_8 {dimension_numbers = #tpu.dot_dimension_numbers<[1], [0], [0], [1], [0, 0, 1, 1], [], []>} : vector<8x4xf32>, vector<4x256xf32>, vector<8x256xf32> -> vector<8x256xf32>
    %c0_9 = arith.constant 0 : index
    %c0_10 = arith.constant 0 : index
    %c0_11 = arith.constant 0 : index
    %56 = vector.load %arg3[%c0_9, %c0_10, %c0_11] : memref<9x8x4xf32, #tpu.memory_space<vmem>>, vector<1x8x4xf32>
    %57 = vector.shape_cast %56 : vector<1x8x4xf32> to vector<8x4xf32>
    %58 = vector.extract_strided_slice %52 {offsets = [0, 0], sizes = [4, 256], strides = [1, 1]} : vector<4x264xf32> to vector<4x256xf32>
    %59 = vector.broadcast %22 : vector<1x256xf32> to vector<4x256xf32>
    %60 = arith.mulf %58, %59 : vector<4x256xf32>
    %cst_12 = arith.constant dense<0.000000e+00> : vector<8x256xf32>
    %61 = tpu.matmul %57, %60, %cst_12 {dimension_numbers = #tpu.dot_dimension_numbers<[1], [0], [0], [1], [0, 0, 1, 1], [], []>} : vector<8x4xf32>, vector<4x256xf32>, vector<8x256xf32> -> vector<8x256xf32>
    %62 = arith.addf %55, %61 : vector<8x256xf32>
    %c1 = arith.constant 1 : index
    %c0_13 = arith.constant 0 : index
    %c0_14 = arith.constant 0 : index
    %63 = vector.load %arg3[%c1, %c0_13, %c0_14] : memref<9x8x4xf32, #tpu.memory_space<vmem>>, vector<1x8x4xf32>
    %64 = vector.shape_cast %63 : vector<1x8x4xf32> to vector<8x4xf32>
    %65 = vector.extract_strided_slice %52 {offsets = [0, 1], sizes = [4, 256], strides = [1, 1]} : vector<4x264xf32> to vector<4x256xf32>
    %66 = vector.broadcast %26 : vector<1x256xf32> to vector<4x256xf32>
    %67 = arith.mulf %65, %66 : vector<4x256xf32>
    %cst_15 = arith.constant dense<0.000000e+00> : vector<8x256xf32>
    %68 = tpu.matmul %64, %67, %cst_15 {dimension_numbers = #tpu.dot_dimension_numbers<[1], [0], [0], [1], [0, 0, 1, 1], [], []>} : vector<8x4xf32>, vector<4x256xf32>, vector<8x256xf32> -> vector<8x256xf32>
    %69 = arith.addf %62, %68 : vector<8x256xf32>
    %c2 = arith.constant 2 : index
    %c0_16 = arith.constant 0 : index
    %c0_17 = arith.constant 0 : index
    %70 = vector.load %arg3[%c2, %c0_16, %c0_17] : memref<9x8x4xf32, #tpu.memory_space<vmem>>, vector<1x8x4xf32>
    %71 = vector.shape_cast %70 : vector<1x8x4xf32> to vector<8x4xf32>
    %72 = vector.extract_strided_slice %52 {offsets = [0, 2], sizes = [4, 256], strides = [1, 1]} : vector<4x264xf32> to vector<4x256xf32>
    %73 = vector.broadcast %30 : vector<1x256xf32> to vector<4x256xf32>
    %74 = arith.mulf %72, %73 : vector<4x256xf32>
    %cst_18 = arith.constant dense<0.000000e+00> : vector<8x256xf32>
    %75 = tpu.matmul %71, %74, %cst_18 {dimension_numbers = #tpu.dot_dimension_numbers<[1], [0], [0], [1], [0, 0, 1, 1], [], []>} : vector<8x4xf32>, vector<4x256xf32>, vector<8x256xf32> -> vector<8x256xf32>
    %76 = arith.addf %69, %75 : vector<8x256xf32>
    %c3 = arith.constant 3 : index
    %c0_19 = arith.constant 0 : index
    %c0_20 = arith.constant 0 : index
    %77 = vector.load %arg3[%c3, %c0_19, %c0_20] : memref<9x8x4xf32, #tpu.memory_space<vmem>>, vector<1x8x4xf32>
    %78 = vector.shape_cast %77 : vector<1x8x4xf32> to vector<8x4xf32>
    %79 = vector.extract_strided_slice %52 {offsets = [0, 3], sizes = [4, 256], strides = [1, 1]} : vector<4x264xf32> to vector<4x256xf32>
    %80 = vector.broadcast %34 : vector<1x256xf32> to vector<4x256xf32>
    %81 = arith.mulf %79, %80 : vector<4x256xf32>
    %cst_21 = arith.constant dense<0.000000e+00> : vector<8x256xf32>
    %82 = tpu.matmul %78, %81, %cst_21 {dimension_numbers = #tpu.dot_dimension_numbers<[1], [0], [0], [1], [0, 0, 1, 1], [], []>} : vector<8x4xf32>, vector<4x256xf32>, vector<8x256xf32> -> vector<8x256xf32>
    %83 = arith.addf %76, %82 : vector<8x256xf32>
    %c5 = arith.constant 5 : index
    %c0_22 = arith.constant 0 : index
    %c0_23 = arith.constant 0 : index
    %84 = vector.load %arg3[%c5, %c0_22, %c0_23] : memref<9x8x4xf32, #tpu.memory_space<vmem>>, vector<1x8x4xf32>
    %85 = vector.shape_cast %84 : vector<1x8x4xf32> to vector<8x4xf32>
    %86 = vector.extract_strided_slice %52 {offsets = [0, 5], sizes = [4, 256], strides = [1, 1]} : vector<4x264xf32> to vector<4x256xf32>
    %87 = vector.broadcast %38 : vector<1x256xf32> to vector<4x256xf32>
    %88 = arith.mulf %86, %87 : vector<4x256xf32>
    %cst_24 = arith.constant dense<0.000000e+00> : vector<8x256xf32>
    %89 = tpu.matmul %85, %88, %cst_24 {dimension_numbers = #tpu.dot_dimension_numbers<[1], [0], [0], [1], [0, 0, 1, 1], [], []>} : vector<8x4xf32>, vector<4x256xf32>, vector<8x256xf32> -> vector<8x256xf32>
    %90 = arith.addf %83, %89 : vector<8x256xf32>
    %c6 = arith.constant 6 : index
    %c0_25 = arith.constant 0 : index
    %c0_26 = arith.constant 0 : index
    %91 = vector.load %arg3[%c6, %c0_25, %c0_26] : memref<9x8x4xf32, #tpu.memory_space<vmem>>, vector<1x8x4xf32>
    %92 = vector.shape_cast %91 : vector<1x8x4xf32> to vector<8x4xf32>
    %93 = vector.extract_strided_slice %52 {offsets = [0, 6], sizes = [4, 256], strides = [1, 1]} : vector<4x264xf32> to vector<4x256xf32>
    %94 = vector.broadcast %42 : vector<1x256xf32> to vector<4x256xf32>
    %95 = arith.mulf %93, %94 : vector<4x256xf32>
    %cst_27 = arith.constant dense<0.000000e+00> : vector<8x256xf32>
    %96 = tpu.matmul %92, %95, %cst_27 {dimension_numbers = #tpu.dot_dimension_numbers<[1], [0], [0], [1], [0, 0, 1, 1], [], []>} : vector<8x4xf32>, vector<4x256xf32>, vector<8x256xf32> -> vector<8x256xf32>
    %97 = arith.addf %90, %96 : vector<8x256xf32>
    %c7 = arith.constant 7 : index
    %c0_28 = arith.constant 0 : index
    %c0_29 = arith.constant 0 : index
    %98 = vector.load %arg3[%c7, %c0_28, %c0_29] : memref<9x8x4xf32, #tpu.memory_space<vmem>>, vector<1x8x4xf32>
    %99 = vector.shape_cast %98 : vector<1x8x4xf32> to vector<8x4xf32>
    %100 = vector.extract_strided_slice %52 {offsets = [0, 7], sizes = [4, 256], strides = [1, 1]} : vector<4x264xf32> to vector<4x256xf32>
    %101 = vector.broadcast %46 : vector<1x256xf32> to vector<4x256xf32>
    %102 = arith.mulf %100, %101 : vector<4x256xf32>
    %cst_30 = arith.constant dense<0.000000e+00> : vector<8x256xf32>
    %103 = tpu.matmul %99, %102, %cst_30 {dimension_numbers = #tpu.dot_dimension_numbers<[1], [0], [0], [1], [0, 0, 1, 1], [], []>} : vector<8x4xf32>, vector<4x256xf32>, vector<8x256xf32> -> vector<8x256xf32>
    %104 = arith.addf %97, %103 : vector<8x256xf32>
    %c8 = arith.constant 8 : index
    %c0_31 = arith.constant 0 : index
    %c0_32 = arith.constant 0 : index
    %105 = vector.load %arg3[%c8, %c0_31, %c0_32] : memref<9x8x4xf32, #tpu.memory_space<vmem>>, vector<1x8x4xf32>
    %106 = vector.shape_cast %105 : vector<1x8x4xf32> to vector<8x4xf32>
    %107 = vector.extract_strided_slice %52 {offsets = [0, 8], sizes = [4, 256], strides = [1, 1]} : vector<4x264xf32> to vector<4x256xf32>
    %108 = vector.broadcast %50 : vector<1x256xf32> to vector<4x256xf32>
    %109 = arith.mulf %107, %108 : vector<4x256xf32>
    %cst_33 = arith.constant dense<0.000000e+00> : vector<8x256xf32>
    %110 = tpu.matmul %106, %109, %cst_33 {dimension_numbers = #tpu.dot_dimension_numbers<[1], [0], [0], [1], [0, 0, 1, 1], [], []>} : vector<8x4xf32>, vector<4x256xf32>, vector<8x256xf32> -> vector<8x256xf32>
    %111 = arith.addf %104, %110 : vector<8x256xf32>
    %c0_34 = arith.constant 0 : index
    %c0_35 = arith.constant 0 : index
    %112 = vector.load %arg4[%c0_34, %c0_35] : memref<8x1xf32, #tpu.memory_space<vmem>>, vector<8x1xf32>
    %113 = vector.broadcast %112 : vector<8x1xf32> to vector<8x256xf32>
    %114 = arith.addf %111, %113 : vector<8x256xf32>
    %cst_36 = arith.constant 0.000000e+00 : f32
    %115 = vector.broadcast %cst_36 : f32 to vector<8x256xf32>
    %116 = arith.maximumf %114, %115 : vector<8x256xf32>
    %cst_37 = arith.constant 0.000000e+00 : f32
    %117 = vector.broadcast %cst_37 : f32 to vector<8x4xf32>
    %118 = tpu.concatenate %117, %116, %117 in 1 : vector<8x4xf32>, vector<8x256xf32>, vector<8x4xf32> -> vector<8x264xf32>
    %c0_38 = arith.constant 0 : index
    %c0_39 = arith.constant 0 : index
    %119 = vector.load %arg6[%c0_38, %c0_39] : memref<8x4xf32, #tpu.memory_space<vmem>>, vector<8x4xf32>
    %cst_40 = arith.constant dense<0.000000e+00> : vector<8x256xf32>
    %120 = tpu.matmul %119, %1, %cst_40 {dimension_numbers = #tpu.dot_dimension_numbers<[1], [0], [0], [1], [0, 0, 1, 1], [], []>} : vector<8x4xf32>, vector<4x256xf32>, vector<8x256xf32> -> vector<8x256xf32>
    %c4_41 = arith.constant 4 : index
    %c0_42 = arith.constant 0 : index
    %c0_43 = arith.constant 0 : index
    %121 = vector.load %arg5[%c4_41, %c0_42, %c0_43] : memref<9x8x8xf32, #tpu.memory_space<vmem>>, vector<1x8x8xf32>
    %122 = vector.shape_cast %121 : vector<1x8x8xf32> to vector<8x8xf32>
    %cst_44 = arith.constant dense<0.000000e+00> : vector<8x256xf32>
    %123 = tpu.matmul %122, %116, %cst_44 {dimension_numbers = #tpu.dot_dimension_numbers<[1], [0], [0], [1], [0, 0, 1, 1], [], []>} : vector<8x8xf32>, vector<8x256xf32>, vector<8x256xf32> -> vector<8x256xf32>
    %124 = arith.addf %120, %123 : vector<8x256xf32>
    %c0_45 = arith.constant 0 : index
    %c0_46 = arith.constant 0 : index
    %c0_47 = arith.constant 0 : index
    %125 = vector.load %arg5[%c0_45, %c0_46, %c0_47] : memref<9x8x8xf32, #tpu.memory_space<vmem>>, vector<1x8x8xf32>
    %126 = vector.shape_cast %125 : vector<1x8x8xf32> to vector<8x8xf32>
    %127 = vector.extract_strided_slice %118 {offsets = [0, 0], sizes = [8, 256], strides = [1, 1]} : vector<8x264xf32> to vector<8x256xf32>
    %128 = vector.broadcast %22 : vector<1x256xf32> to vector<8x256xf32>
    %129 = arith.mulf %127, %128 : vector<8x256xf32>
    %cst_48 = arith.constant dense<0.000000e+00> : vector<8x256xf32>
    %130 = tpu.matmul %126, %129, %cst_48 {dimension_numbers = #tpu.dot_dimension_numbers<[1], [0], [0], [1], [0, 0, 1, 1], [], []>} : vector<8x8xf32>, vector<8x256xf32>, vector<8x256xf32> -> vector<8x256xf32>
    %131 = arith.addf %124, %130 : vector<8x256xf32>
    %c1_49 = arith.constant 1 : index
    %c0_50 = arith.constant 0 : index
    %c0_51 = arith.constant 0 : index
    %132 = vector.load %arg5[%c1_49, %c0_50, %c0_51] : memref<9x8x8xf32, #tpu.memory_space<vmem>>, vector<1x8x8xf32>
    %133 = vector.shape_cast %132 : vector<1x8x8xf32> to vector<8x8xf32>
    %134 = vector.extract_strided_slice %118 {offsets = [0, 1], sizes = [8, 256], strides = [1, 1]} : vector<8x264xf32> to vector<8x256xf32>
    %135 = vector.broadcast %26 : vector<1x256xf32> to vector<8x256xf32>
    %136 = arith.mulf %134, %135 : vector<8x256xf32>
    %cst_52 = arith.constant dense<0.000000e+00> : vector<8x256xf32>
    %137 = tpu.matmul %133, %136, %cst_52 {dimension_numbers = #tpu.dot_dimension_numbers<[1], [0], [0], [1], [0, 0, 1, 1], [], []>} : vector<8x8xf32>, vector<8x256xf32>, vector<8x256xf32> -> vector<8x256xf32>
    %138 = arith.addf %131, %137 : vector<8x256xf32>
    %c2_53 = arith.constant 2 : index
    %c0_54 = arith.constant 0 : index
    %c0_55 = arith.constant 0 : index
    %139 = vector.load %arg5[%c2_53, %c0_54, %c0_55] : memref<9x8x8xf32, #tpu.memory_space<vmem>>, vector<1x8x8xf32>
    %140 = vector.shape_cast %139 : vector<1x8x8xf32> to vector<8x8xf32>
    %141 = vector.extract_strided_slice %118 {offsets = [0, 2], sizes = [8, 256], strides = [1, 1]} : vector<8x264xf32> to vector<8x256xf32>
    %142 = vector.broadcast %30 : vector<1x256xf32> to vector<8x256xf32>
    %143 = arith.mulf %141, %142 : vector<8x256xf32>
    %cst_56 = arith.constant dense<0.000000e+00> : vector<8x256xf32>
    %144 = tpu.matmul %140, %143, %cst_56 {dimension_numbers = #tpu.dot_dimension_numbers<[1], [0], [0], [1], [0, 0, 1, 1], [], []>} : vector<8x8xf32>, vector<8x256xf32>, vector<8x256xf32> -> vector<8x256xf32>
    %145 = arith.addf %138, %144 : vector<8x256xf32>
    %c3_57 = arith.constant 3 : index
    %c0_58 = arith.constant 0 : index
    %c0_59 = arith.constant 0 : index
    %146 = vector.load %arg5[%c3_57, %c0_58, %c0_59] : memref<9x8x8xf32, #tpu.memory_space<vmem>>, vector<1x8x8xf32>
    %147 = vector.shape_cast %146 : vector<1x8x8xf32> to vector<8x8xf32>
    %148 = vector.extract_strided_slice %118 {offsets = [0, 3], sizes = [8, 256], strides = [1, 1]} : vector<8x264xf32> to vector<8x256xf32>
    %149 = vector.broadcast %34 : vector<1x256xf32> to vector<8x256xf32>
    %150 = arith.mulf %148, %149 : vector<8x256xf32>
    %cst_60 = arith.constant dense<0.000000e+00> : vector<8x256xf32>
    %151 = tpu.matmul %147, %150, %cst_60 {dimension_numbers = #tpu.dot_dimension_numbers<[1], [0], [0], [1], [0, 0, 1, 1], [], []>} : vector<8x8xf32>, vector<8x256xf32>, vector<8x256xf32> -> vector<8x256xf32>
    %152 = arith.addf %145, %151 : vector<8x256xf32>
    %c5_61 = arith.constant 5 : index
    %c0_62 = arith.constant 0 : index
    %c0_63 = arith.constant 0 : index
    %153 = vector.load %arg5[%c5_61, %c0_62, %c0_63] : memref<9x8x8xf32, #tpu.memory_space<vmem>>, vector<1x8x8xf32>
    %154 = vector.shape_cast %153 : vector<1x8x8xf32> to vector<8x8xf32>
    %155 = vector.extract_strided_slice %118 {offsets = [0, 5], sizes = [8, 256], strides = [1, 1]} : vector<8x264xf32> to vector<8x256xf32>
    %156 = vector.broadcast %38 : vector<1x256xf32> to vector<8x256xf32>
    %157 = arith.mulf %155, %156 : vector<8x256xf32>
    %cst_64 = arith.constant dense<0.000000e+00> : vector<8x256xf32>
    %158 = tpu.matmul %154, %157, %cst_64 {dimension_numbers = #tpu.dot_dimension_numbers<[1], [0], [0], [1], [0, 0, 1, 1], [], []>} : vector<8x8xf32>, vector<8x256xf32>, vector<8x256xf32> -> vector<8x256xf32>
    %159 = arith.addf %152, %158 : vector<8x256xf32>
    %c6_65 = arith.constant 6 : index
    %c0_66 = arith.constant 0 : index
    %c0_67 = arith.constant 0 : index
    %160 = vector.load %arg5[%c6_65, %c0_66, %c0_67] : memref<9x8x8xf32, #tpu.memory_space<vmem>>, vector<1x8x8xf32>
    %161 = vector.shape_cast %160 : vector<1x8x8xf32> to vector<8x8xf32>
    %162 = vector.extract_strided_slice %118 {offsets = [0, 6], sizes = [8, 256], strides = [1, 1]} : vector<8x264xf32> to vector<8x256xf32>
    %163 = vector.broadcast %42 : vector<1x256xf32> to vector<8x256xf32>
    %164 = arith.mulf %162, %163 : vector<8x256xf32>
    %cst_68 = arith.constant dense<0.000000e+00> : vector<8x256xf32>
    %165 = tpu.matmul %161, %164, %cst_68 {dimension_numbers = #tpu.dot_dimension_numbers<[1], [0], [0], [1], [0, 0, 1, 1], [], []>} : vector<8x8xf32>, vector<8x256xf32>, vector<8x256xf32> -> vector<8x256xf32>
    %166 = arith.addf %159, %165 : vector<8x256xf32>
    %c7_69 = arith.constant 7 : index
    %c0_70 = arith.constant 0 : index
    %c0_71 = arith.constant 0 : index
    %167 = vector.load %arg5[%c7_69, %c0_70, %c0_71] : memref<9x8x8xf32, #tpu.memory_space<vmem>>, vector<1x8x8xf32>
    %168 = vector.shape_cast %167 : vector<1x8x8xf32> to vector<8x8xf32>
    %169 = vector.extract_strided_slice %118 {offsets = [0, 7], sizes = [8, 256], strides = [1, 1]} : vector<8x264xf32> to vector<8x256xf32>
    %170 = vector.broadcast %46 : vector<1x256xf32> to vector<8x256xf32>
    %171 = arith.mulf %169, %170 : vector<8x256xf32>
    %cst_72 = arith.constant dense<0.000000e+00> : vector<8x256xf32>
    %172 = tpu.matmul %168, %171, %cst_72 {dimension_numbers = #tpu.dot_dimension_numbers<[1], [0], [0], [1], [0, 0, 1, 1], [], []>} : vector<8x8xf32>, vector<8x256xf32>, vector<8x256xf32> -> vector<8x256xf32>
    %173 = arith.addf %166, %172 : vector<8x256xf32>
    %c8_73 = arith.constant 8 : index
    %c0_74 = arith.constant 0 : index
    %c0_75 = arith.constant 0 : index
    %174 = vector.load %arg5[%c8_73, %c0_74, %c0_75] : memref<9x8x8xf32, #tpu.memory_space<vmem>>, vector<1x8x8xf32>
    %175 = vector.shape_cast %174 : vector<1x8x8xf32> to vector<8x8xf32>
    %176 = vector.extract_strided_slice %118 {offsets = [0, 8], sizes = [8, 256], strides = [1, 1]} : vector<8x264xf32> to vector<8x256xf32>
    %177 = vector.broadcast %50 : vector<1x256xf32> to vector<8x256xf32>
    %178 = arith.mulf %176, %177 : vector<8x256xf32>
    %cst_76 = arith.constant dense<0.000000e+00> : vector<8x256xf32>
    %179 = tpu.matmul %175, %178, %cst_76 {dimension_numbers = #tpu.dot_dimension_numbers<[1], [0], [0], [1], [0, 0, 1, 1], [], []>} : vector<8x8xf32>, vector<8x256xf32>, vector<8x256xf32> -> vector<8x256xf32>
    %180 = arith.addf %173, %179 : vector<8x256xf32>
    %c0_77 = arith.constant 0 : index
    %c0_78 = arith.constant 0 : index
    %181 = vector.load %arg7[%c0_77, %c0_78] : memref<8x1xf32, #tpu.memory_space<vmem>>, vector<8x1xf32>
    %182 = vector.broadcast %181 : vector<8x1xf32> to vector<8x256xf32>
    %183 = arith.addf %180, %182 : vector<8x256xf32>
    %cst_79 = arith.constant 0.000000e+00 : f32
    %184 = vector.broadcast %cst_79 : f32 to vector<8x256xf32>
    %185 = arith.maximumf %183, %184 : vector<8x256xf32>
    %c0_80 = arith.constant 0 : index
    %c0_81 = arith.constant 0 : index
    %c0_82 = arith.constant 0 : index
    %186 = vector.load %arg8[%c0_80, %c0_81, %c0_82] : memref<1x8x256xf32, #tpu.memory_space<vmem>>, vector<1x8x256xf32>
    %187 = vector.shape_cast %186 : vector<1x8x256xf32> to vector<8x256xf32>
    %188 = vector.shape_cast %185 : vector<8x256xf32> to vector<1x8x256xf32>
    tpu.vector_store %arg8[%c0_80, %c0_81, %c0_82], %188 {strides = array<i32>} : memref<1x8x256xf32, #tpu.memory_space<vmem>>, vector<1x8x256xf32>,
    return
  }
  func.func @transform_0(%arg0: i32, %arg1: i32) -> (i32, i32, i32) {
    %c0_i32 = arith.constant 0 : i32
    %c0_i32_0 = arith.constant 0 : i32
    return %arg0, %c0_i32, %arg1 : i32, i32, i32
  }
  func.func @transform_1(%arg0: i32, %arg1: i32) -> (i32, i32, i32) {
    %c0_i32 = arith.constant 0 : i32
    %c0_i32_0 = arith.constant 0 : i32
    %c0_i32_1 = arith.constant 0 : i32
    %c0_i32_2 = arith.constant 0 : i32
    return %c0_i32, %c0_i32_0, %c0_i32_1 : i32, i32, i32
  }
  func.func @transform_2(%arg0: i32, %arg1: i32) -> (i32, i32) {
    %c0_i32 = arith.constant 0 : i32
    %c0_i32_0 = arith.constant 0 : i32
    %c0_i32_1 = arith.constant 0 : i32
    return %c0_i32, %c0_i32_0 : i32, i32
  }
  func.func @transform_3(%arg0: i32, %arg1: i32) -> (i32, i32, i32) {
    %c0_i32 = arith.constant 0 : i32
    %c0_i32_0 = arith.constant 0 : i32
    %c0_i32_1 = arith.constant 0 : i32
    %c0_i32_2 = arith.constant 0 : i32
    return %c0_i32, %c0_i32_0, %c0_i32_1 : i32, i32, i32
  }
  func.func @transform_4(%arg0: i32, %arg1: i32) -> (i32, i32) {
    %c0_i32 = arith.constant 0 : i32
    %c0_i32_0 = arith.constant 0 : i32
    %c0_i32_1 = arith.constant 0 : i32
    return %c0_i32, %c0_i32_0 : i32, i32
  }
  func.func @transform_5(%arg0: i32, %arg1: i32) -> (i32, i32) {
    %c0_i32 = arith.constant 0 : i32
    %c0_i32_0 = arith.constant 0 : i32
    %c0_i32_1 = arith.constant 0 : i32
    return %c0_i32, %c0_i32_0 : i32, i32
  }
  func.func @transform_6(%arg0: i32, %arg1: i32) -> (i32, i32, i32) {
    %c0_i32 = arith.constant 0 : i32
    %c0_i32_0 = arith.constant 0 : i32
    return %arg0, %c0_i32, %arg1 : i32, i32, i32
  }
}

</mosaic_0001>

<llo_original>
// kernel: _lambda_.1
$region0: #{_lambda_.1}
  #allocation0 [shape = 'u32[]', space=smem, size = 0x4, offset = 0x4, fixed_abs, tag = 'smem constant byte address 0x4 - core index']
  #allocation1 [shape = 'u32[72,128]{1,0:T(1,128)}', space=vmem, size = 0x9000, scoped, tag = 'internal scratch']
  %s0 = inlined_call_operand.vmem [shape: f32[2,4,256], index: 0, kind: input, shape index: {}]
  %s1 = inlined_call_operand.vmem [shape: f32[9,8,4], index: 1, kind: input, shape index: {}]
  %s2 = inlined_call_operand.vmem [shape: f32[8,1], index: 2, kind: input, shape index: {}]
  %s3 = inlined_call_operand.vmem [shape: f32[9,8,8], index: 3, kind: input, shape index: {}]
  %s4 = inlined_call_operand.vmem [shape: f32[8,4], index: 4, kind: input, shape index: {}]
  %s5 = inlined_call_operand.vmem [shape: f32[8,1], index: 5, kind: input, shape index: {}]
  %s6 = inlined_call_operand.vmem [shape: f32[2,8,256], index: 6, kind: output, shape index: {}]
  %s7 = sld [smem:[#allocation0]]
  $region57: #{_lambda_.1} parent=0
    _
  %s9 = ssub.s32 1, %s7
  %s10 = scalar_select 0, %s9, %s7
  loop: start=0, step=1, limit=4
  $region2: #{_lambda_.1} parent=0 // loop_pre_header
    _
  $region3: #{_lambda_.1} parent=0 // loop_header
    %s12 = sphi 0, %s16
    %p13 = scmp.ge.s32.totalorder %s12, 4
    %s19 = sphi 0, %s31
    %s20 = sphi 0, %s27
    %s21 = sphi 0, %s19
    %s22 = sphi 0, %s20
    %s23 = sphi 0, %s21
    %s24 = sphi 0, %s22
    %s36 = sphi 0, %s38
    %s39 = sphi 0, %s36
    %s40 = sphi 0, %s39
    %s56 = sphi 0, %s40
    %s60 = sphi 0, %s60
    %s62 = sphi 0, %s60
    %s63 = sphi 0, %s62
    %s77 = sphi 0, %s63
    %s81 = sphi 0, %s81
    %s83 = sphi 0, %s81
    %s84 = sphi 0, %s83
    %s98 = sphi 0, %s84
    %s102 = sphi 0, %s102
    %s104 = sphi 0, %s102
    %s105 = sphi 0, %s104
    %s119 = sphi 0, %s105
    %s123 = sphi 0, %s123
    %s125 = sphi 0, %s123
    %s126 = sphi 0, %s125
    %s140 = sphi 0, %s126
    %s144 = sphi 0, %s144
    %s146 = sphi 0, %s144
    %s147 = sphi 0, %s146
    %s161 = sphi 0, %s147
    %s169 = sphi 0, %s171
    %s172 = sphi 0, %s169
    %s173 = sphi 0, %s172
    %s189 = sphi 0, %s173
  $region4: #{_lambda_.1} parent=0 // loop_header_branch
    %15 = sbr.rel (%p13) target = $region8
  $region5: #{_lambda_.1} parent=0 // loop_body
    %s17 = ssub.s32 %s12, 1
    %s18 = ssub.s32 %s12, 2
    %s25 = sadd.s32 1, %s20
    %p26 = scmp.ge.s32.totalorder %s25, 1
    %s27 = scalar_select %p26, 0, %s25
    %s28 = sadd.s32 1, %s19
    %s29 = scalar_select %p26, %s28, %s19
    %p30 = scmp.ge.s32.totalorder %s29, 2
    %s31 = scalar_select %p30, 0, %s29
    %s32 = ssub.s32 %s19, %s31
    %s33 = ssub.s32 %s20, %s27
    %s34 = sor.u32 %s32, %s33
    %p35 = scmp.eq.s32.totalorder %s34, 0
    %s37 = sadd.s32 %s36, 1
    %s38 = scalar_select %p35, %s36, %s37
    %p41 = pneg %p35
    %p42 = scmp.eq.s32.totalorder %s12, 1
    %p43 = por %p41, %p42
    %p44 = scmp.ne.s32.totalorder %s36, %s39
    %p45 = scmp.eq.s32.totalorder %s12, 0
    %p46 = por %p44, %p45
    %p47 = scmp.ne.s32.totalorder %s36, %s39
    %p48 = scmp.eq.s32.totalorder %s17, 1
    %p49 = por %p47, %p48
    %p50 = scmp.ne.s32.totalorder %s39, %s40
    %p51 = scmp.eq.s32.totalorder %s17, 0
    %p52 = por %p50, %p51
    %p53 = scmp.ne.s32.totalorder %s39, %s40
    %p54 = scmp.eq.s32.totalorder %s18, 1
    %p55 = por %p53, %p54
    %p57 = scmp.ne.s32.totalorder %s40, %s56
    %p58 = scmp.eq.s32.totalorder %s18, 0
    %p59 = por %p57, %p58
    %s61 = sadd.s32 %s60, 1
    %p64 = scmp.eq.s32.totalorder %s12, 1
    %p65 = scmp.ne.s32.totalorder %s60, %s62
    %p66 = scmp.eq.s32.totalorder %s12, 0
    %p67 = por %p65, %p66
    %p68 = scmp.ne.s32.totalorder %s60, %s62
    %p69 = scmp.eq.s32.totalorder %s17, 1
    %p70 = por %p68, %p69
    %p71 = scmp.ne.s32.totalorder %s62, %s63
    %p72 = scmp.eq.s32.totalorder %s17, 0
    %p73 = por %p71, %p72
    %p74 = scmp.ne.s32.totalorder %s62, %s63
    %p75 = scmp.eq.s32.totalorder %s18, 1
    %p76 = por %p74, %p75
    %p78 = scmp.ne.s32.totalorder %s63, %s77
    %p79 = scmp.eq.s32.totalorder %s18, 0
    %p80 = por %p78, %p79
    %s82 = sadd.s32 %s81, 1
    %p85 = scmp.eq.s32.totalorder %s12, 1
    %p86 = scmp.ne.s32.totalorder %s81, %s83
    %p87 = scmp.eq.s32.totalorder %s12, 0
    %p88 = por %p86, %p87
    %p89 = scmp.ne.s32.totalorder %s81, %s83
    %p90 = scmp.eq.s32.totalorder %s17, 1
    %p91 = por %p89, %p90
    %p92 = scmp.ne.s32.totalorder %s83, %s84
    %p93 = scmp.eq.s32.totalorder %s17, 0
    %p94 = por %p92, %p93
    %p95 = scmp.ne.s32.totalorder %s83, %s84
    %p96 = scmp.eq.s32.totalorder %s18, 1
    %p97 = por %p95, %p96
    %p99 = scmp.ne.s32.totalorder %s84, %s98
    %p100 = scmp.eq.s32.totalorder %s18, 0
    %p101 = por %p99, %p100
    %s103 = sadd.s32 %s102, 1
    %p106 = scmp.eq.s32.totalorder %s12, 1
    %p107 = scmp.ne.s32.totalorder %s102, %s104
    %p108 = scmp.eq.s32.totalorder %s12, 0
    %p109 = por %p107, %p108
    %p110 = scmp.ne.s32.totalorder %s102, %s104
    %p111 = scmp.eq.s32.totalorder %s17, 1
    %p112 = por %p110, %p111
    %p113 = scmp.ne.s32.totalorder %s104, %s105
    %p114 = scmp.eq.s32.totalorder %s17, 0
    %p115 = por %p113, %p114
    %p116 = scmp.ne.s32.totalorder %s104, %s105
    %p117 = scmp.eq.s32.totalorder %s18, 1
    %p118 = por %p116, %p117
    %p120 = scmp.ne.s32.totalorder %s105, %s119
    %p121 = scmp.eq.s32.totalorder %s18, 0
    %p122 = por %p120, %p121
    %s124 = sadd.s32 %s123, 1
    %p127 = scmp.eq.s32.totalorder %s12, 1
    %p128 = scmp.ne.s32.totalorder %s123, %s125
    %p129 = scmp.eq.s32.totalorder %s12, 0
    %p130 = por %p128, %p129
    %p131 = scmp.ne.s32.totalorder %s123, %s125
    %p132 = scmp.eq.s32.totalorder %s17, 1
    %p133 = por %p131, %p132
    %p134 = scmp.ne.s32.totalorder %s125, %s126
    %p135 = scmp.eq.s32.totalorder %s17, 0
    %p136 = por %p134, %p135
    %p137 = scmp.ne.s32.totalorder %s125, %s126
    %p138 = scmp.eq.s32.totalorder %s18, 1
    %p139 = por %p137, %p138
    %p141 = scmp.ne.s32.totalorder %s126, %s140
    %p142 = scmp.eq.s32.totalorder %s18, 0
    %p143 = por %p141, %p142
    %s145 = sadd.s32 %s144, 1
    %p148 = scmp.eq.s32.totalorder %s12, 1
    %p149 = scmp.ne.s32.totalorder %s144, %s146
    %p150 = scmp.eq.s32.totalorder %s12, 0
    %p151 = por %p149, %p150
    %p152 = scmp.ne.s32.totalorder %s144, %s146
    %p153 = scmp.eq.s32.totalorder %s17, 1
    %p154 = por %p152, %p153
    %p155 = scmp.ne.s32.totalorder %s146, %s147
    %p156 = scmp.eq.s32.totalorder %s17, 0
    %p157 = por %p155, %p156
    %p158 = scmp.ne.s32.totalorder %s146, %s147
    %p159 = scmp.eq.s32.totalorder %s18, 1
    %p160 = por %p158, %p159
    %p162 = scmp.ne.s32.totalorder %s147, %s161
    %p163 = scmp.eq.s32.totalorder %s18, 0
    %p164 = por %p162, %p163
    %s165 = ssub.s32 %s19, %s31
    %s166 = ssub.s32 %s20, %s27
    %s167 = sor.u32 %s165, %s166
    %p168 = scmp.eq.s32.totalorder %s167, 0
    %s170 = sadd.s32 %s169, 1
    %s171 = scalar_select %p168, %s169, %s170
    %p174 = pneg %p168
    %p175 = scmp.eq.s32.totalorder %s12, 1
    %p176 = por %p174, %p175
    %p177 = scmp.ne.s32.totalorder %s169, %s172
    %p178 = scmp.eq.s32.totalorder %s12, 0
    %p179 = por %p177, %p178
    %p180 = scmp.ne.s32.totalorder %s169, %s172
    %p181 = scmp.eq.s32.totalorder %s17, 1
    %p182 = por %p180, %p181
    %p183 = scmp.ne.s32.totalorder %s172, %s173
    %p184 = scmp.eq.s32.totalorder %s17, 0
    %p185 = por %p183, %p184
    %p186 = scmp.ne.s32.totalorder %s172, %s173
    %p187 = scmp.eq.s32.totalorder %s18, 1
    %p188 = por %p186, %p187
    %p190 = scmp.ne.s32.totalorder %s173, %s189
    %p191 = scmp.eq.s32.totalorder %s18, 0
    %p192 = por %p190, %p191
    %p193 = scmp.le.s32.totalorder 1, %s12
    %p194 = scmp.lt.s32.totalorder %s12, 3
    %p195 = pnand %p193, %p194
    %p196 = pneg %p195
    // Predicated region
    $region9: #{_lambda_.1} parent=5 // pred_check
      _
    $region10: #{_lambda_.1} parent=5 // pred_check_branch
      %198 = sbr.rel (%p195) target = $region12
    $region11: #{_lambda_.1} parent=5 // pred_region
      %s199 = ssub.s32 %s12, 1
      // Predicated region
      $region13: #{_lambda_.1} parent=11 // pred_check
        %p200 = pneg %p73
      $region14: #{_lambda_.1} parent=11 // pred_check_branch
        %202 = sbr.rel (%p200) target = $region16
      $region15: #{_lambda_.1} parent=11 // pred_region
        _
      $region16: #{_lambda_.1} parent=11 // pred_fallthru
        _
      // Predicated region
      $region17: #{_lambda_.1} parent=11 // pred_check
        %p203 = pneg %p94
      $region18: #{_lambda_.1} parent=11 // pred_check_branch
        %205 = sbr.rel (%p203) target = $region20
      $region19: #{_lambda_.1} parent=11 // pred_region
        _
      $region20: #{_lambda_.1} parent=11 // pred_fallthru
        _
      // Predicated region
      $region21: #{_lambda_.1} parent=11 // pred_check
        %p206 = pneg %p115
      $region22: #{_lambda_.1} parent=11 // pred_check_branch
        %208 = sbr.rel (%p206) target = $region24
      $region23: #{_lambda_.1} parent=11 // pred_region
        _
      $region24: #{_lambda_.1} parent=11 // pred_fallthru
        _
      // Predicated region
      $region25: #{_lambda_.1} parent=11 // pred_check
        %p209 = pneg %p136
      $region26: #{_lambda_.1} parent=11 // pred_check_branch
        %211 = sbr.rel (%p209) target = $region28
      $region27: #{_lambda_.1} parent=11 // pred_region
        _
      $region28: #{_lambda_.1} parent=11 // pred_fallthru
        _
      // Predicated region
      $region29: #{_lambda_.1} parent=11 // pred_check
        %p212 = pneg %p157
      $region30: #{_lambda_.1} parent=11 // pred_check_branch
        %214 = sbr.rel (%p212) target = $region32
      $region31: #{_lambda_.1} parent=11 // pred_region
        _
      $region32: #{_lambda_.1} parent=11 // pred_fallthru
        _
    $region12: #{_lambda_.1} parent=5 // pred_fallthru
      _
    %p215 = scmp.lt.s32.totalorder %s12, 2
    // Predicated region
    $region33: #{_lambda_.1} parent=5 // pred_check
      %p216 = pneg %p215
    $region34: #{_lambda_.1} parent=5 // pred_check_branch
      %218 = sbr.rel (%p216) target = $region36
    $region35: #{_lambda_.1} parent=5 // pred_region
      // Predicated region
      $region37: #{_lambda_.1} parent=35 // pred_check
        %p219 = pneg %p46
      $region38: #{_lambda_.1} parent=35 // pred_check_branch
        %221 = sbr.rel (%p219) target = $region40
      $region39: #{_lambda_.1} parent=35 // pred_region
        %s222 = smul.u32 2, %s20
        %p223 = scmp.lt.s32.totalorder %s19, 1
        %s224 = scalar_select %p223, %s19, 1
        %p225 = scmp.lt.s32.totalorder %s222, 1
        %s226 = scalar_select %p225, %s222, 1
        %s227 = smul.addr %s224, 2
        %s228 = sadd.s32 %s226, %s227
        %s229 = smul.addr %s228, 4
        %s230 = scalar_lea.vmem %s0, %s229
        %s231 = smul.u32 2, %s20
      $region40: #{_lambda_.1} parent=35 // pred_fallthru
        _
    $region36: #{_lambda_.1} parent=5 // pred_fallthru
      _
    %p232 = scmp.le.s32.totalorder 1, %s12
    %p233 = scmp.lt.s32.totalorder %s12, 3
    %p234 = pnand %p232, %p233
    %p235 = pneg %p234
    // Predicated region
    $region41: #{_lambda_.1} parent=5 // pred_check
      _
    $region42: #{_lambda_.1} parent=5 // pred_check_branch
      %237 = sbr.rel (%p234) target = $region44
    $region43: #{_lambda_.1} parent=5 // pred_region
      %s238 = ssub.s32 %s12, 1
      %s239 = smul.u32 2, %s22
      %p240 = scmp.lt.s32.totalorder %s21, 1
      %s241 = scalar_select %p240, %s21, 1
      %p242 = scmp.lt.s32.totalorder %s239, 1
      %s243 = scalar_select %p242, %s239, 1
      %s244 = smul.addr %s241, 2
      %s245 = sadd.s32 %s243, %s244
      %s246 = smul.addr %s245, 4
      %s247 = scalar_lea.vmem %s0, %s246
      %p248 = pneg %p52
      %p249 = pneg %p49
      %p250 = pneg %p73
      %p251 = pneg %p70
      %p252 = pneg %p94
      %p253 = pneg %p91
      %p254 = pneg %p115
      %p255 = pneg %p112
      %p256 = pneg %p136
      %p257 = pneg %p133
      %p258 = pneg %p157
      %p259 = pneg %p154
      %p260 = pneg %p185
      %p261 = pneg %p182
      %s262 = smul.u32 2, %s22
      %p263 = scmp.lt.s32.totalorder %s21, 1
      %s264 = scalar_select %p263, %s21, 1
      %p265 = scmp.lt.s32.totalorder %s262, 1
      %s266 = scalar_select %p265, %s262, 1
      %s267 = smul.addr %s264, 2
      %s268 = sadd.s32 %s266, %s267
      %s269 = smul.addr %s268, 8
      %s270 = scalar_lea.vmem %s6, %s269
      %s271 = smul.u32 2, %s22
      %p272 = scmp.lt.s32.totalorder %s21, 1
      %s273 = scalar_select %p272, %s21, 1
      %p274 = scmp.lt.s32.totalorder %s271, 1
      %s275 = scalar_select %p274, %s271, 1
      %s276 = smul.addr %s273, 2
      %s277 = sadd.s32 %s275, %s276
      %s278 = smul.addr %s277, 4
      %s279 = scalar_lea.vmem %s0, %s278
      %s280 = smul.u32 2, %s22
      %s281 = smul.u32 2, %s22
      %p282 = scmp.lt.s32.totalorder %s21, 1
      %s283 = scalar_select %p282, %s21, 1
      %p284 = scmp.lt.s32.totalorder %s281, 1
      %s285 = scalar_select %p284, %s281, 1
      %s286 = smul.addr %s283, 2
      %s287 = sadd.s32 %s285, %s286
      %s288 = smul.addr %s287, 8
      %s289 = scalar_lea.vmem %s6, %s288
      %s290 = smul.u32 2, %s22
      %v291 = vld [vmem:[%s279] sm:$0xff]
      %v292 = vlaneseq
      %v293 = vand.u32 %v292, 127
      %v294 = vadd.s32 %v293, 128
      %vm295 = vcmp.lt.s32.totalorder %v293, 0
      %v296 = vsub.s32 0, %v293
      %v297 = vsel %vm295, %v296, %v293
      %v298 = vshrl.u32 %v297, 4
      %v299 = vand.u32 %v297, 15
      %v300 = vsub.s32 0, %v299
      %v301 = vsel %vm295, %v300, %v299
      %vm302 = vcmp.lt.s32.totalorder %v294, 0
      %v303 = vsub.s32 0, %v294
      %v304 = vsel %vm302, %v303, %v294
      %v305 = vshrl.u32 %v304, 4
      %v306 = vand.u32 %v304, 15
      %v307 = vsub.s32 0, %v306
      %v308 = vsel %vm302, %v307, %v306
      %vm309 = vcmp.ne.s32.totalorder %v301, 0
      %vm310 = vcmp.ne.s32.totalorder %v308, 0
      %vm311 = vcmp.lt.s32.totalorder %v301, 0
      %vm312 = vcmp.lt.s32.totalorder %v308, 0
      %vm313 = vmand %vm311, %vm309
      %vm314 = vmand %vm312, %vm310
      %v315 = vadd.s32 %v301, 16
      %v316 = vadd.s32 %v308, 16
      %v317 = vsel %vm313, %v315, %v301
      %v318 = vsel %vm314, %v316, %v308
      %vm319 = vcmp.ge.s32.totalorder %v317, 4
      %vm320 = vcmp.ge.s32.totalorder %v318, 4
      %v321 = vsel %vm319, 1, 0
      %v322 = vsel %vm320, 1, 0
      %v323 = vcvt.s32.f32 %v321
      %v324 = vcvt.s32.f32 %v322
      %vm325 = vcmp.ge.s32.totalorder %v317, 3
      %vm326 = vcmp.ge.s32.totalorder %v318, 3
      %v327 = vsel %vm325, 1, 0
      %v328 = vsel %vm326, 1, 0
      %v329 = vcvt.s32.f32 %v327
      %v330 = vcvt.s32.f32 %v328
      %vm331 = vcmp.ge.s32.totalorder %v317, 2
      %vm332 = vcmp.ge.s32.totalorder %v318, 2
      %v333 = vsel %vm331, 1, 0
      %v334 = vsel %vm332, 1, 0
      %v335 = vcvt.s32.f32 %v333
      %v336 = vcvt.s32.f32 %v334
      %vm337 = vcmp.ge.s32.totalorder %v317, 1
      %vm338 = vcmp.ge.s32.totalorder %v318, 1
      %v339 = vsel %vm337, 1, 0
      %v340 = vsel %vm338, 1, 0
      %v341 = vcvt.s32.f32 %v339
      %v342 = vcvt.s32.f32 %v340
      %vm343 = vcmp.lt.s32.totalorder %v317, 15
      %vm344 = vcmp.lt.s32.totalorder %v318, 15
      %v345 = vsel %vm343, 1, 0
      %v346 = vsel %vm344, 1, 0
      %v347 = vcvt.s32.f32 %v345
      %v348 = vcvt.s32.f32 %v346
      %vm349 = vcmp.lt.s32.totalorder %v317, 14
      %vm350 = vcmp.lt.s32.totalorder %v318, 14
      %v351 = vsel %vm349, 1, 0
      %v352 = vsel %vm350, 1, 0
      %v353 = vcvt.s32.f32 %v351
      %v354 = vcvt.s32.f32 %v352
      %vm355 = vcmp.lt.s32.totalorder %v317, 13
      %vm356 = vcmp.lt.s32.totalorder %v318, 13
      %v357 = vsel %vm355, 1, 0
      %v358 = vsel %vm356, 1, 0
      %v359 = vcvt.s32.f32 %v357
      %v360 = vcvt.s32.f32 %v358
      %vm361 = vcmp.lt.s32.totalorder %v317, 12
      %vm362 = vcmp.lt.s32.totalorder %v318, 12
      %v363 = vsel %vm361, 1, 0
      %v364 = vsel %vm362, 1, 0
      %v365 = vcvt.s32.f32 %v363
      %v366 = vcvt.s32.f32 %v364
      %368 = vst [vmem:[#allocation1] ss:$2 sm:$0xff] %v291
      %v369 = vld.sshfl [vmem:[#allocation1] sm:$0xff pattern:$0x75316420]
      %v370 = vld.sshfl [vmem:[#allocation1 + $0x8] sm:$0xff pattern:$0x75316420]
      %371 = vrot.lane.b32.xlu0 %v369, 4
      %v372 = vpop.permute.xlu0 %371
      %373 = vrot.lane.b32.xlu0 %v370, 4
      %v374 = vpop.permute.xlu0 %373
      %vm375 = vcmask 31744
      %v376 = vsel %vm375, %v372, %v374
      %v380 = vsel %vm375, 0.0, %v372
      %v381 = vsel %vm375, %v374, 0.0
      %s382 = scalar_lea.vmem %s1, 32
      %v383 = vld [vmem:[%s382] sm:$0xff]
      %v384 = vld [vmem:[%s1] sm:$0xff]
      %v385 = vmul.f32 %v380, %v323
      %v386 = vmul.f32 %v376, %v324
      %v388 = vsel %vm375, %v384, 0
      %vm390 = vcmask 1043456
      %v392 = vsel %vm390, %v385, 0
      %v395 = vsel %vm390, %v386, 0
      %397 = vmatpush.msra.mxu0 0.0
      %398 = vmatpush.msra.mxu0 0.0
      %399 = vmatpush.msra.mxu0 0.0
      %400 = vmatpush.msra.mxu0 0.0
      %401 = vmatpush.msra.mxu0 0.0
      %402 = vmatpush.msra.mxu0 0.0
      %403 = vmatpush.msra.mxu0 0.0
      %404 = vmatpush.msra.mxu0 0.0
      %405 = vmatpush.msra.mxu0 0.0
      %406 = vmatpush.msra.mxu0 0.0
      %407 = vmatpush.msra.mxu0 0.0
      %408 = vmatpush.msra.mxu0 0.0
      %409 = vmatpush.msra.mxu0 0.0
      %410 = vmatpush.msra.mxu0 0.0
      %411 = vmatpush.msra.mxu0 0.0
      %412 = vmatpush.msra.mxu0 %v392
      %413 = vmatmul.f32.gmra.mxu0 %v388
      %v414 = vpop.f32.mrf.mxu0
      %v415 = vadd.f32 0.0, %v414
      %416 = vdwg.mxu0
      %417 = vmatpush.msra.mxu0 0.0
      %418 = vmatpush.msra.mxu0 0.0
      %419 = vmatpush.msra.mxu0 0.0
      %420 = vmatpush.msra.mxu0 0.0
      %421 = vmatpush.msra.mxu0 0.0
      %422 = vmatpush.msra.mxu0 0.0
      %423 = vmatpush.msra.mxu0 0.0
      %424 = vmatpush.msra.mxu0 0.0
      %425 = vmatpush.msra.mxu0 0.0
      %426 = vmatpush.msra.mxu0 0.0
      %427 = vmatpush.msra.mxu0 0.0
      %428 = vmatpush.msra.mxu0 0.0
      %429 = vmatpush.msra.mxu0 0.0
      %430 = vmatpush.msra.mxu0 0.0
      %431 = vmatpush.msra.mxu0 0.0
      %432 = vmatpush.msra.mxu0 %v395
      %433 = vmatmul.f32.gmra.mxu0 %v388
      %v434 = vpop.f32.mrf.mxu0
      %v435 = vadd.f32 0.0, %v434
      %436 = vdwg.mxu0
      %437 = vst [vmem:[#allocation1] ss:$2 sm:$0xff] %v291
      %v438 = vld.sshfl [vmem:[#allocation1] sm:$0xff pattern:$0x75316420]
      %v439 = vld.sshfl [vmem:[#allocation1 + $0x8] sm:$0xff pattern:$0x75316420]
      %v441 = vsel %vm375, %v383, 0
      %v443 = vsel %vm390, %v438, 0
      %v445 = vsel %vm390, %v439, 0
      %447 = vmatpush.msra.mxu0 0.0
      %448 = vmatpush.msra.mxu0 0.0
      %449 = vmatpush.msra.mxu0 0.0
      %450 = vmatpush.msra.mxu0 0.0
      %451 = vmatpush.msra.mxu0 0.0
      %452 = vmatpush.msra.mxu0 0.0
      %453 = vmatpush.msra.mxu0 0.0
      %454 = vmatpush.msra.mxu0 0.0
      %455 = vmatpush.msra.mxu0 0.0
      %456 = vmatpush.msra.mxu0 0.0
      %457 = vmatpush.msra.mxu0 0.0
      %458 = vmatpush.msra.mxu0 0.0
      %459 = vmatpush.msra.mxu0 0.0
      %460 = vmatpush.msra.mxu0 0.0
      %461 = vmatpush.msra.mxu0 0.0
      %462 = vmatpush.msra.mxu0 %v443
      %463 = vmatmul.f32.gmra.mxu0 %v441
      %v464 = vpop.f32.mrf.mxu0
      %v465 = vadd.f32 %v415, %v464
      %466 = vdwg.mxu0
      %467 = vmatpush.msra.mxu0 0.0
      %468 = vmatpush.msra.mxu0 0.0
      %469 = vmatpush.msra.mxu0 0.0
      %470 = vmatpush.msra.mxu0 0.0
      %471 = vmatpush.msra.mxu0 0.0
      %472 = vmatpush.msra.mxu0 0.0
      %473 = vmatpush.msra.mxu0 0.0
      %474 = vmatpush.msra.mxu0 0.0
      %475 = vmatpush.msra.mxu0 0.0
      %476 = vmatpush.msra.mxu0 0.0
      %477 = vmatpush.msra.mxu0 0.0
      %478 = vmatpush.msra.mxu0 0.0
      %479 = vmatpush.msra.mxu0 0.0
      %480 = vmatpush.msra.mxu0 0.0
      %481 = vmatpush.msra.mxu0 0.0
      %482 = vmatpush.msra.mxu0 %v445
      %483 = vmatmul.f32.gmra.mxu0 %v441
      %v484 = vpop.f32.mrf.mxu0
      %v485 = vadd.f32 %v435, %v484
      %486 = vdwg.mxu0
      %s487 = scalar_lea.vmem %s1, 8
      %v488 = vld [vmem:[%s487] sm:$0xff]
      %491 = vrot.lane.b32.xlu0 %v329, 1
      %v492 = vpop.permute.xlu0 %491
      %493 = vrot.lane.b32.xlu0 %v330, 1
      %v494 = vpop.permute.xlu0 %493
      %vm495 = vcmask 7168
      %v496 = vsel %vm495, %v492, %v494
      %v500 = vmul.f32 %v380, %v492
      %v501 = vmul.f32 %v376, %v496
      %v502 = vmul.f32 %v381, %v494
      %506 = vrot.lane.b32.xlu0 %v500, 127
      %v507 = vpop.permute.xlu0 %506
      %508 = vrot.lane.b32.xlu0 %v501, 127
      %v509 = vpop.permute.xlu0 %508
      %510 = vrot.lane.b32.xlu0 %v502, 127
      %v511 = vpop.permute.xlu0 %510
      %vm512 = vcmask 1039360
      %v513 = vsel %vm512, %v507, %v509
      %v514 = vsel %vm512, %v509, %v511
      %v516 = vsel %vm375, %v488, 0
      %v518 = vsel %vm390, %v513, 0
      %v520 = vsel %vm390, %v514, 0
      %522 = vmatpush.msra.mxu0 0.0
      %523 = vmatpush.msra.mxu0 0.0
      %524 = vmatpush.msra.mxu0 0.0
      %525 = vmatpush.msra.mxu0 0.0
      %526 = vmatpush.msra.mxu0 0.0
      %527 = vmatpush.msra.mxu0 0.0
      %528 = vmatpush.msra.mxu0 0.0
      %529 = vmatpush.msra.mxu0 0.0
      %530 = vmatpush.msra.mxu0 0.0
      %531 = vmatpush.msra.mxu0 0.0
      %532 = vmatpush.msra.mxu0 0.0
      %533 = vmatpush.msra.mxu0 0.0
      %534 = vmatpush.msra.mxu0 0.0
      %535 = vmatpush.msra.mxu0 0.0
      %536 = vmatpush.msra.mxu0 0.0
      %537 = vmatpush.msra.mxu0 %v518
      %538 = vmatmul.f32.gmra.mxu0 %v516
      %v539 = vpop.f32.mrf.mxu0
      %v540 = vadd.f32 0.0, %v539
      %541 = vdwg.mxu0
      %542 = vmatpush.msra.mxu0 0.0
      %543 = vmatpush.msra.mxu0 0.0
      %544 = vmatpush.msra.mxu0 0.0
      %545 = vmatpush.msra.mxu0 0.0
      %546 = vmatpush.msra.mxu0 0.0
      %547 = vmatpush.msra.mxu0 0.0
      %548 = vmatpush.msra.mxu0 0.0
      %549 = vmatpush.msra.mxu0 0.0
      %550 = vmatpush.msra.mxu0 0.0
      %551 = vmatpush.msra.mxu0 0.0
      %552 = vmatpush.msra.mxu0 0.0
      %553 = vmatpush.msra.mxu0 0.0
      %554 = vmatpush.msra.mxu0 0.0
      %555 = vmatpush.msra.mxu0 0.0
      %556 = vmatpush.msra.mxu0 0.0
      %557 = vmatpush.msra.mxu0 %v520
      %558 = vmatmul.f32.gmra.mxu0 %v516
      %v559 = vpop.f32.mrf.mxu0
      %v560 = vadd.f32 0.0, %v559
      %561 = vdwg.mxu0
      %v562 = vadd.f32 %v465, %v540
      %v563 = vadd.f32 %v485, %v560
      %s564 = scalar_lea.vmem %s1, 16
      %v565 = vld [vmem:[%s564] sm:$0xff]
      %568 = vrot.lane.b32.xlu0 %v335, 2
      %v569 = vpop.permute.xlu0 %568
      %570 = vrot.lane.b32.xlu0 %v336, 2
      %v571 = vpop.permute.xlu0 %570
      %vm572 = vcmask 15360
      %v573 = vsel %vm572, %v569, %v571
      %v577 = vmul.f32 %v380, %v569
      %v578 = vmul.f32 %v376, %v573
      %v579 = vmul.f32 %v381, %v571
      %583 = vrot.lane.b32.xlu0 %v577, 126
      %v584 = vpop.permute.xlu0 %583
      %585 = vrot.lane.b32.xlu0 %v578, 126
      %v586 = vpop.permute.xlu0 %585
      %587 = vrot.lane.b32.xlu0 %v579, 126
      %v588 = vpop.permute.xlu0 %587
      %vm589 = vcmask 1031168
      %v590 = vsel %vm589, %v584, %v586
      %v591 = vsel %vm589, %v586, %v588
      %v593 = vsel %vm375, %v565, 0
      %v595 = vsel %vm390, %v590, 0
      %v597 = vsel %vm390, %v591, 0
      %599 = vmatpush.msra.mxu0 0.0
      %600 = vmatpush.msra.mxu0 0.0
      %601 = vmatpush.msra.mxu0 0.0
      %602 = vmatpush.msra.mxu0 0.0
      %603 = vmatpush.msra.mxu0 0.0
      %604 = vmatpush.msra.mxu0 0.0
      %605 = vmatpush.msra.mxu0 0.0
      %606 = vmatpush.msra.mxu0 0.0
      %607 = vmatpush.msra.mxu0 0.0
      %608 = vmatpush.msra.mxu0 0.0
      %609 = vmatpush.msra.mxu0 0.0
      %610 = vmatpush.msra.mxu0 0.0
      %611 = vmatpush.msra.mxu0 0.0
      %612 = vmatpush.msra.mxu0 0.0
      %613 = vmatpush.msra.mxu0 0.0
      %614 = vmatpush.msra.mxu0 %v595
      %615 = vmatmul.f32.gmra.mxu0 %v593
      %v616 = vpop.f32.mrf.mxu0
      %v617 = vadd.f32 0.0, %v616
      %618 = vdwg.mxu0
      %619 = vmatpush.msra.mxu0 0.0
      %620 = vmatpush.msra.mxu0 0.0
      %621 = vmatpush.msra.mxu0 0.0
      %622 = vmatpush.msra.mxu0 0.0
      %623 = vmatpush.msra.mxu0 0.0
      %624 = vmatpush.msra.mxu0 0.0
      %625 = vmatpush.msra.mxu0 0.0
      %626 = vmatpush.msra.mxu0 0.0
      %627 = vmatpush.msra.mxu0 0.0
      %628 = vmatpush.msra.mxu0 0.0
      %629 = vmatpush.msra.mxu0 0.0
      %630 = vmatpush.msra.mxu0 0.0
      %631 = vmatpush.msra.mxu0 0.0
      %632 = vmatpush.msra.mxu0 0.0
      %633 = vmatpush.msra.mxu0 0.0
      %634 = vmatpush.msra.mxu0 %v597
      %635 = vmatmul.f32.gmra.mxu0 %v593
      %v636 = vpop.f32.mrf.mxu0
      %v637 = vadd.f32 0.0, %v636
      %638 = vdwg.mxu0
      %v639 = vadd.f32 %v562, %v617
      %v640 = vadd.f32 %v563, %v637
      %s641 = scalar_lea.vmem %s1, 24
      %v642 = vld [vmem:[%s641] sm:$0xff]
      %645 = vrot.lane.b32.xlu0 %v341, 3
      %v646 = vpop.permute.xlu0 %645
      %647 = vrot.lane.b32.xlu0 %v342, 3
      %v648 = vpop.permute.xlu0 %647
      %vm649 = vcmask 23552
      %v650 = vsel %vm649, %v646, %v648
      %v654 = vmul.f32 %v380, %v646
      %v655 = vmul.f32 %v376, %v650
      %v656 = vmul.f32 %v381, %v648
      %660 = vrot.lane.b32.xlu0 %v654, 125
      %v661 = vpop.permute.xlu0 %660
      %662 = vrot.lane.b32.xlu0 %v655, 125
      %v663 = vpop.permute.xlu0 %662
      %664 = vrot.lane.b32.xlu0 %v656, 125
      %v665 = vpop.permute.xlu0 %664
      %vm666 = vcmask 1022976
      %v667 = vsel %vm666, %v661, %v663
      %v668 = vsel %vm666, %v663, %v665
      %v670 = vsel %vm375, %v642, 0
      %v672 = vsel %vm390, %v667, 0
      %v674 = vsel %vm390, %v668, 0
      %676 = vmatpush.msra.mxu0 0.0
      %677 = vmatpush.msra.mxu0 0.0
      %678 = vmatpush.msra.mxu0 0.0
      %679 = vmatpush.msra.mxu0 0.0
      %680 = vmatpush.msra.mxu0 0.0
      %681 = vmatpush.msra.mxu0 0.0
      %682 = vmatpush.msra.mxu0 0.0
      %683 = vmatpush.msra.mxu0 0.0
      %684 = vmatpush.msra.mxu0 0.0
      %685 = vmatpush.msra.mxu0 0.0
      %686 = vmatpush.msra.mxu0 0.0
      %687 = vmatpush.msra.mxu0 0.0
      %688 = vmatpush.msra.mxu0 0.0
      %689 = vmatpush.msra.mxu0 0.0
      %690 = vmatpush.msra.mxu0 0.0
      %691 = vmatpush.msra.mxu0 %v672
      %692 = vmatmul.f32.gmra.mxu0 %v670
      %v693 = vpop.f32.mrf.mxu0
      %v694 = vadd.f32 0.0, %v693
      %695 = vdwg.mxu0
      %696 = vmatpush.msra.mxu0 0.0
      %697 = vmatpush.msra.mxu0 0.0
      %698 = vmatpush.msra.mxu0 0.0
      %699 = vmatpush.msra.mxu0 0.0
      %700 = vmatpush.msra.mxu0 0.0
      %701 = vmatpush.msra.mxu0 0.0
      %702 = vmatpush.msra.mxu0 0.0
      %703 = vmatpush.msra.mxu0 0.0
      %704 = vmatpush.msra.mxu0 0.0
      %705 = vmatpush.msra.mxu0 0.0
      %706 = vmatpush.msra.mxu0 0.0
      %707 = vmatpush.msra.mxu0 0.0
      %708 = vmatpush.msra.mxu0 0.0
      %709 = vmatpush.msra.mxu0 0.0
      %710 = vmatpush.msra.mxu0 0.0
      %711 = vmatpush.msra.mxu0 %v674
      %712 = vmatmul.f32.gmra.mxu0 %v670
      %v713 = vpop.f32.mrf.mxu0
      %v714 = vadd.f32 0.0, %v713
      %715 = vdwg.mxu0
      %v716 = vadd.f32 %v639, %v694
      %v717 = vadd.f32 %v640, %v714
      %s718 = scalar_lea.vmem %s1, 40
      %v719 = vld [vmem:[%s718] sm:$0xff]
      %722 = vrot.lane.b32.xlu0 %v347, 5
      %v723 = vpop.permute.xlu0 %722
      %724 = vrot.lane.b32.xlu0 %v348, 5
      %v725 = vpop.permute.xlu0 %724
      %vm726 = vcmask 39936
      %v727 = vsel %vm726, %v723, %v725
      %v731 = vmul.f32 %v380, %v723
      %v732 = vmul.f32 %v376, %v727
      %v733 = vmul.f32 %v381, %v725
      %737 = vrot.lane.b32.xlu0 %v731, 123
      %v738 = vpop.permute.xlu0 %737
      %739 = vrot.lane.b32.xlu0 %v732, 123
      %v740 = vpop.permute.xlu0 %739
      %741 = vrot.lane.b32.xlu0 %v733, 123
      %v742 = vpop.permute.xlu0 %741
      %vm743 = vcmask 1006592
      %v744 = vsel %vm743, %v738, %v740
      %v745 = vsel %vm743, %v740, %v742
      %v747 = vsel %vm375, %v719, 0
      %v749 = vsel %vm390, %v744, 0
      %v751 = vsel %vm390, %v745, 0
      %753 = vmatpush.msra.mxu0 0.0
      %754 = vmatpush.msra.mxu0 0.0
      %755 = vmatpush.msra.mxu0 0.0
      %756 = vmatpush.msra.mxu0 0.0
      %757 = vmatpush.msra.mxu0 0.0
      %758 = vmatpush.msra.mxu0 0.0
      %759 = vmatpush.msra.mxu0 0.0
      %760 = vmatpush.msra.mxu0 0.0
      %761 = vmatpush.msra.mxu0 0.0
      %762 = vmatpush.msra.mxu0 0.0
      %763 = vmatpush.msra.mxu0 0.0
      %764 = vmatpush.msra.mxu0 0.0
      %765 = vmatpush.msra.mxu0 0.0
      %766 = vmatpush.msra.mxu0 0.0
      %767 = vmatpush.msra.mxu0 0.0
      %768 = vmatpush.msra.mxu0 %v749
      %769 = vmatmul.f32.gmra.mxu0 %v747
      %v770 = vpop.f32.mrf.mxu0
      %v771 = vadd.f32 0.0, %v770
      %772 = vdwg.mxu0
      %773 = vmatpush.msra.mxu0 0.0
      %774 = vmatpush.msra.mxu0 0.0
      %775 = vmatpush.msra.mxu0 0.0
      %776 = vmatpush.msra.mxu0 0.0
      %777 = vmatpush.msra.mxu0 0.0
      %778 = vmatpush.msra.mxu0 0.0
      %779 = vmatpush.msra.mxu0 0.0
      %780 = vmatpush.msra.mxu0 0.0
      %781 = vmatpush.msra.mxu0 0.0
      %782 = vmatpush.msra.mxu0 0.0
      %783 = vmatpush.msra.mxu0 0.0
      %784 = vmatpush.msra.mxu0 0.0
      %785 = vmatpush.msra.mxu0 0.0
      %786 = vmatpush.msra.mxu0 0.0
      %787 = vmatpush.msra.mxu0 0.0
      %788 = vmatpush.msra.mxu0 %v751
      %789 = vmatmul.f32.gmra.mxu0 %v747
      %v790 = vpop.f32.mrf.mxu0
      %v791 = vadd.f32 0.0, %v790
      %792 = vdwg.mxu0
      %v793 = vadd.f32 %v716, %v771
      %v794 = vadd.f32 %v717, %v791
      %s795 = scalar_lea.vmem %s1, 48
      %v796 = vld [vmem:[%s795] sm:$0xff]
      %799 = vrot.lane.b32.xlu0 %v353, 6
      %v800 = vpop.permute.xlu0 %799
      %801 = vrot.lane.b32.xlu0 %v354, 6
      %v802 = vpop.permute.xlu0 %801
      %vm803 = vcmask 48128
      %v804 = vsel %vm803, %v800, %v802
      %v808 = vmul.f32 %v380, %v800
      %v809 = vmul.f32 %v376, %v804
      %v810 = vmul.f32 %v381, %v802
      %814 = vrot.lane.b32.xlu0 %v808, 122
      %v815 = vpop.permute.xlu0 %814
      %816 = vrot.lane.b32.xlu0 %v809, 122
      %v817 = vpop.permute.xlu0 %816
      %818 = vrot.lane.b32.xlu0 %v810, 122
      %v819 = vpop.permute.xlu0 %818
      %vm820 = vcmask 998400
      %v821 = vsel %vm820, %v815, %v817
      %v822 = vsel %vm820, %v817, %v819
      %v824 = vsel %vm375, %v796, 0
      %v826 = vsel %vm390, %v821, 0
      %v828 = vsel %vm390, %v822, 0
      %830 = vmatpush.msra.mxu0 0.0
      %831 = vmatpush.msra.mxu0 0.0
      %832 = vmatpush.msra.mxu0 0.0
      %833 = vmatpush.msra.mxu0 0.0
      %834 = vmatpush.msra.mxu0 0.0
      %835 = vmatpush.msra.mxu0 0.0
      %836 = vmatpush.msra.mxu0 0.0
      %837 = vmatpush.msra.mxu0 0.0
      %838 = vmatpush.msra.mxu0 0.0
      %839 = vmatpush.msra.mxu0 0.0
      %840 = vmatpush.msra.mxu0 0.0
      %841 = vmatpush.msra.mxu0 0.0
      %842 = vmatpush.msra.mxu0 0.0
      %843 = vmatpush.msra.mxu0 0.0
      %844 = vmatpush.msra.mxu0 0.0
      %845 = vmatpush.msra.mxu0 %v826
      %846 = vmatmul.f32.gmra.mxu0 %v824
      %v847 = vpop.f32.mrf.mxu0
      %v848 = vadd.f32 0.0, %v847
      %849 = vdwg.mxu0
      %850 = vmatpush.msra.mxu0 0.0
      %851 = vmatpush.msra.mxu0 0.0
      %852 = vmatpush.msra.mxu0 0.0
      %853 = vmatpush.msra.mxu0 0.0
      %854 = vmatpush.msra.mxu0 0.0
      %855 = vmatpush.msra.mxu0 0.0
      %856 = vmatpush.msra.mxu0 0.0
      %857 = vmatpush.msra.mxu0 0.0
      %858 = vmatpush.msra.mxu0 0.0
      %859 = vmatpush.msra.mxu0 0.0
      %860 = vmatpush.msra.mxu0 0.0
      %861 = vmatpush.msra.mxu0 0.0
      %862 = vmatpush.msra.mxu0 0.0
      %863 = vmatpush.msra.mxu0 0.0
      %864 = vmatpush.msra.mxu0 0.0
      %865 = vmatpush.msra.mxu0 %v828
      %866 = vmatmul.f32.gmra.mxu0 %v824
      %v867 = vpop.f32.mrf.mxu0
      %v868 = vadd.f32 0.0, %v867
      %869 = vdwg.mxu0
      %v870 = vadd.f32 %v793, %v848
      %v871 = vadd.f32 %v794, %v868
      %s872 = scalar_lea.vmem %s1, 56
      %v873 = vld [vmem:[%s872] sm:$0xff]
      %876 = vrot.lane.b32.xlu0 %v359, 7
      %v877 = vpop.permute.xlu0 %876
      %878 = vrot.lane.b32.xlu0 %v360, 7
      %v879 = vpop.permute.xlu0 %878
      %vm880 = vcmask 56320
      %v881 = vsel %vm880, %v877, %v879
      %v885 = vmul.f32 %v380, %v877
      %v886 = vmul.f32 %v376, %v881
      %v887 = vmul.f32 %v381, %v879
      %891 = vrot.lane.b32.xlu0 %v885, 121
      %v892 = vpop.permute.xlu0 %891
      %893 = vrot.lane.b32.xlu0 %v886, 121
      %v894 = vpop.permute.xlu0 %893
      %895 = vrot.lane.b32.xlu0 %v887, 121
      %v896 = vpop.permute.xlu0 %895
      %vm897 = vcmask 990208
      %v898 = vsel %vm897, %v892, %v894
      %v899 = vsel %vm897, %v894, %v896
      %v901 = vsel %vm375, %v873, 0
      %v903 = vsel %vm390, %v898, 0
      %v905 = vsel %vm390, %v899, 0
      %907 = vmatpush.msra.mxu0 0.0
      %908 = vmatpush.msra.mxu0 0.0
      %909 = vmatpush.msra.mxu0 0.0
      %910 = vmatpush.msra.mxu0 0.0
      %911 = vmatpush.msra.mxu0 0.0
      %912 = vmatpush.msra.mxu0 0.0
      %913 = vmatpush.msra.mxu0 0.0
      %914 = vmatpush.msra.mxu0 0.0
      %915 = vmatpush.msra.mxu0 0.0
      %916 = vmatpush.msra.mxu0 0.0
      %917 = vmatpush.msra.mxu0 0.0
      %918 = vmatpush.msra.mxu0 0.0
      %919 = vmatpush.msra.mxu0 0.0
      %920 = vmatpush.msra.mxu0 0.0
      %921 = vmatpush.msra.mxu0 0.0
      %922 = vmatpush.msra.mxu0 %v903
      %923 = vmatmul.f32.gmra.mxu0 %v901
      %v924 = vpop.f32.mrf.mxu0
      %v925 = vadd.f32 0.0, %v924
      %926 = vdwg.mxu0
      %927 = vmatpush.msra.mxu0 0.0
      %928 = vmatpush.msra.mxu0 0.0
      %929 = vmatpush.msra.mxu0 0.0
      %930 = vmatpush.msra.mxu0 0.0
      %931 = vmatpush.msra.mxu0 0.0
      %932 = vmatpush.msra.mxu0 0.0
      %933 = vmatpush.msra.mxu0 0.0
      %934 = vmatpush.msra.mxu0 0.0
      %935 = vmatpush.msra.mxu0 0.0
      %936 = vmatpush.msra.mxu0 0.0
      %937 = vmatpush.msra.mxu0 0.0
      %938 = vmatpush.msra.mxu0 0.0
      %939 = vmatpush.msra.mxu0 0.0
      %940 = vmatpush.msra.mxu0 0.0
      %941 = vmatpush.msra.mxu0 0.0
      %942 = vmatpush.msra.mxu0 %v905
      %943 = vmatmul.f32.gmra.mxu0 %v901
      %v944 = vpop.f32.mrf.mxu0
      %v945 = vadd.f32 0.0, %v944
      %946 = vdwg.mxu0
      %v947 = vadd.f32 %v870, %v925
      %v948 = vadd.f32 %v871, %v945
      %s949 = scalar_lea.vmem %s1, 64
      %v950 = vld [vmem:[%s949] sm:$0xff]
      %953 = vrot.lane.b32.xlu0 %v365, 8
      %v954 = vpop.permute.xlu0 %953
      %955 = vrot.lane.b32.xlu0 %v366, 8
      %v956 = vpop.permute.xlu0 %955
      %vm957 = vcmask 64512
      %v958 = vsel %vm957, %v954, %v956
      %v962 = vmul.f32 %v380, %v954
      %v963 = vmul.f32 %v376, %v958
      %v964 = vmul.f32 %v381, %v956
      %968 = vrot.lane.b32.xlu0 %v962, 120
      %v969 = vpop.permute.xlu0 %968
      %970 = vrot.lane.b32.xlu0 %v963, 120
      %v971 = vpop.permute.xlu0 %970
      %972 = vrot.lane.b32.xlu0 %v964, 120
      %v973 = vpop.permute.xlu0 %972
      %vm974 = vcmask 982016
      %v975 = vsel %vm974, %v969, %v971
      %v976 = vsel %vm974, %v971, %v973
      %v978 = vsel %vm375, %v950, 0
      %v980 = vsel %vm390, %v975, 0
      %v982 = vsel %vm390, %v976, 0
      %984 = vmatpush.msra.mxu0 0.0
      %985 = vmatpush.msra.mxu0 0.0
      %986 = vmatpush.msra.mxu0 0.0
      %987 = vmatpush.msra.mxu0 0.0
      %988 = vmatpush.msra.mxu0 0.0
      %989 = vmatpush.msra.mxu0 0.0
      %990 = vmatpush.msra.mxu0 0.0
      %991 = vmatpush.msra.mxu0 0.0
      %992 = vmatpush.msra.mxu0 0.0
      %993 = vmatpush.msra.mxu0 0.0
      %994 = vmatpush.msra.mxu0 0.0
      %995 = vmatpush.msra.mxu0 0.0
      %996 = vmatpush.msra.mxu0 0.0
      %997 = vmatpush.msra.mxu0 0.0
      %998 = vmatpush.msra.mxu0 0.0
      %999 = vmatpush.msra.mxu0 %v980
      %1000 = vmatmul.f32.gmra.mxu0 %v978
      %v1001 = vpop.f32.mrf.mxu0
      %v1002 = vadd.f32 0.0, %v1001
      %1003 = vdwg.mxu0
      %1004 = vmatpush.msra.mxu0 0.0
      %1005 = vmatpush.msra.mxu0 0.0
      %1006 = vmatpush.msra.mxu0 0.0
      %1007 = vmatpush.msra.mxu0 0.0
      %1008 = vmatpush.msra.mxu0 0.0
      %1009 = vmatpush.msra.mxu0 0.0
      %1010 = vmatpush.msra.mxu0 0.0
      %1011 = vmatpush.msra.mxu0 0.0
      %1012 = vmatpush.msra.mxu0 0.0
      %1013 = vmatpush.msra.mxu0 0.0
      %1014 = vmatpush.msra.mxu0 0.0
      %1015 = vmatpush.msra.mxu0 0.0
      %1016 = vmatpush.msra.mxu0 0.0
      %1017 = vmatpush.msra.mxu0 0.0
      %1018 = vmatpush.msra.mxu0 0.0
      %1019 = vmatpush.msra.mxu0 %v982
      %1020 = vmatmul.f32.gmra.mxu0 %v978
      %v1021 = vpop.f32.mrf.mxu0
      %v1022 = vadd.f32 0.0, %v1021
      %1023 = vdwg.mxu0
      %v1024 = vadd.f32 %v947, %v1002
      %v1025 = vadd.f32 %v948, %v1022
      %v1026 = vld [vmem:[%s2] sm:$0xff]
      %1028 = vset.pattern.permute.xlu0 0
      %1029 = vperm.xlu0 %1028, %v1026
      %v1030 = vpop.permute.xlu0 %1029
      %v1032 = vadd.f32 %v1024, %v1030
      %v1033 = vadd.f32 %v1025, %v1030
      %v1034 = vmax.f32 %v1032, 0.0
      %v1035 = vmax.f32 %v1033, 0.0
      %1038 = vrot.lane.b32.xlu0 %v1034, 4
      %v1039 = vpop.permute.xlu0 %1038
      %1040 = vrot.lane.b32.xlu0 %v1035, 4
      %v1041 = vpop.permute.xlu0 %1040
      %v1042 = vsel %vm375, %v1039, %v1041
      %v1046 = vsel %vm375, 0.0, %v1039
      %v1047 = vsel %vm375, %v1041, 0.0
      %v1048 = vld [vmem:[%s4] sm:$0xff]
      %s1049 = scalar_lea.vmem %s3, 32
      %v1050 = vld [vmem:[%s1049] sm:$0xff]
      %v1052 = vsel %vm957, %v1050, 0
      %1054 = vmatpush.msra.mxu0 0.0
      %1055 = vmatpush.msra.mxu0 0.0
      %1056 = vmatpush.msra.mxu0 0.0
      %1057 = vmatpush.msra.mxu0 0.0
      %1058 = vmatpush.msra.mxu0 0.0
      %1059 = vmatpush.msra.mxu0 0.0
      %1060 = vmatpush.msra.mxu0 0.0
      %1061 = vmatpush.msra.mxu0 0.0
      %1062 = vmatpush.msra.mxu0 0.0
      %1063 = vmatpush.msra.mxu0 0.0
      %1064 = vmatpush.msra.mxu0 0.0
      %1065 = vmatpush.msra.mxu0 0.0
      %1066 = vmatpush.msra.mxu0 0.0
      %1067 = vmatpush.msra.mxu0 0.0
      %1068 = vmatpush.msra.mxu0 0.0
      %1069 = vmatpush.msra.mxu0 %v1034
      %1070 = vmatmul.f32.gmra.mxu0 %v1052
      %v1071 = vpop.f32.mrf.mxu0
      %v1072 = vadd.f32 0.0, %v1071
      %1073 = vdwg.mxu0
      %1074 = vmatpush.msra.mxu0 0.0
      %1075 = vmatpush.msra.mxu0 0.0
      %1076 = vmatpush.msra.mxu0 0.0
      %1077 = vmatpush.msra.mxu0 0.0
      %1078 = vmatpush.msra.mxu0 0.0
      %1079 = vmatpush.msra.mxu0 0.0
      %1080 = vmatpush.msra.mxu0 0.0
      %1081 = vmatpush.msra.mxu0 0.0
      %1082 = vmatpush.msra.mxu0 0.0
      %1083 = vmatpush.msra.mxu0 0.0
      %1084 = vmatpush.msra.mxu0 0.0
      %1085 = vmatpush.msra.mxu0 0.0
      %1086 = vmatpush.msra.mxu0 0.0
      %1087 = vmatpush.msra.mxu0 0.0
      %1088 = vmatpush.msra.mxu0 0.0
      %1089 = vmatpush.msra.mxu0 %v1035
      %1090 = vmatmul.f32.gmra.mxu0 %v1052
      %v1091 = vpop.f32.mrf.mxu0
      %v1092 = vadd.f32 0.0, %v1091
      %1093 = vdwg.mxu0
      %1094 = vst [vmem:[#allocation1] ss:$2 sm:$0xff] %v291
      %v1095 = vld.sshfl [vmem:[#allocation1] sm:$0xff pattern:$0x75316420]
      %v1096 = vld.sshfl [vmem:[#allocation1 + $0x8] sm:$0xff pattern:$0x75316420]
      %v1098 = vsel %vm375, %v1048, 0
      %v1100 = vsel %vm390, %v1095, 0
      %v1102 = vsel %vm390, %v1096, 0
      %1104 = vmatpush.msra.mxu0 0.0
      %1105 = vmatpush.msra.mxu0 0.0
      %1106 = vmatpush.msra.mxu0 0.0
      %1107 = vmatpush.msra.mxu0 0.0
      %1108 = vmatpush.msra.mxu0 0.0
      %1109 = vmatpush.msra.mxu0 0.0
      %1110 = vmatpush.msra.mxu0 0.0
      %1111 = vmatpush.msra.mxu0 0.0
      %1112 = vmatpush.msra.mxu0 0.0
      %1113 = vmatpush.msra.mxu0 0.0
      %1114 = vmatpush.msra.mxu0 0.0
      %1115 = vmatpush.msra.mxu0 0.0
      %1116 = vmatpush.msra.mxu0 0.0
      %1117 = vmatpush.msra.mxu0 0.0
      %1118 = vmatpush.msra.mxu0 0.0
      %1119 = vmatpush.msra.mxu0 %v1100
      %1120 = vmatmul.f32.gmra.mxu0 %v1098
      %v1121 = vpop.f32.mrf.mxu0
      %v1122 = vadd.f32 %v1072, %v1121
      %1123 = vdwg.mxu0
      %1124 = vmatpush.msra.mxu0 0.0
      %1125 = vmatpush.msra.mxu0 0.0
      %1126 = vmatpush.msra.mxu0 0.0
      %1127 = vmatpush.msra.mxu0 0.0
      %1128 = vmatpush.msra.mxu0 0.0
      %1129 = vmatpush.msra.mxu0 0.0
      %1130 = vmatpush.msra.mxu0 0.0
      %1131 = vmatpush.msra.mxu0 0.0
      %1132 = vmatpush.msra.mxu0 0.0
      %1133 = vmatpush.msra.mxu0 0.0
      %1134 = vmatpush.msra.mxu0 0.0
      %1135 = vmatpush.msra.mxu0 0.0
      %1136 = vmatpush.msra.mxu0 0.0
      %1137 = vmatpush.msra.mxu0 0.0
      %1138 = vmatpush.msra.mxu0 0.0
      %1139 = vmatpush.msra.mxu0 %v1102
      %1140 = vmatmul.f32.gmra.mxu0 %v1098
      %v1141 = vpop.f32.mrf.mxu0
      %v1142 = vadd.f32 %v1092, %v1141
      %1143 = vdwg.mxu0
      %v1144 = vld [vmem:[%s3] sm:$0xff]
      %v1145 = vmul.f32 %v1046, %v323
      %v1146 = vmul.f32 %v1042, %v324
      %v1148 = vsel %vm957, %v1144, 0
      %1150 = vmatpush.msra.mxu0 0.0
      %1151 = vmatpush.msra.mxu0 0.0
      %1152 = vmatpush.msra.mxu0 0.0
      %1153 = vmatpush.msra.mxu0 0.0
      %1154 = vmatpush.msra.mxu0 0.0
      %1155 = vmatpush.msra.mxu0 0.0
      %1156 = vmatpush.msra.mxu0 0.0
      %1157 = vmatpush.msra.mxu0 0.0
      %1158 = vmatpush.msra.mxu0 0.0
      %1159 = vmatpush.msra.mxu0 0.0
      %1160 = vmatpush.msra.mxu0 0.0
      %1161 = vmatpush.msra.mxu0 0.0
      %1162 = vmatpush.msra.mxu0 0.0
      %1163 = vmatpush.msra.mxu0 0.0
      %1164 = vmatpush.msra.mxu0 0.0
      %1165 = vmatpush.msra.mxu0 %v1145
      %1166 = vmatmul.f32.gmra.mxu0 %v1148
      %v1167 = vpop.f32.mrf.mxu0
      %v1168 = vadd.f32 0.0, %v1167
      %1169 = vdwg.mxu0
      %1170 = vmatpush.msra.mxu0 0.0
      %1171 = vmatpush.msra.mxu0 0.0
      %1172 = vmatpush.msra.mxu0 0.0
      %1173 = vmatpush.msra.mxu0 0.0
      %1174 = vmatpush.msra.mxu0 0.0
      %1175 = vmatpush.msra.mxu0 0.0
      %1176 = vmatpush.msra.mxu0 0.0
      %1177 = vmatpush.msra.mxu0 0.0
      %1178 = vmatpush.msra.mxu0 0.0
      %1179 = vmatpush.msra.mxu0 0.0
      %1180 = vmatpush.msra.mxu0 0.0
      %1181 = vmatpush.msra.mxu0 0.0
      %1182 = vmatpush.msra.mxu0 0.0
      %1183 = vmatpush.msra.mxu0 0.0
      %1184 = vmatpush.msra.mxu0 0.0
      %1185 = vmatpush.msra.mxu0 %v1146
      %1186 = vmatmul.f32.gmra.mxu0 %v1148
      %v1187 = vpop.f32.mrf.mxu0
      %v1188 = vadd.f32 0.0, %v1187
      %1189 = vdwg.mxu0
      %v1190 = vadd.f32 %v1122, %v1168
      %v1191 = vadd.f32 %v1142, %v1188
      %s1192 = scalar_lea.vmem %s3, 8
      %v1193 = vld [vmem:[%s1192] sm:$0xff]
      %v1194 = vmul.f32 %v1046, %v492
      %v1195 = vmul.f32 %v1042, %v496
      %v1196 = vmul.f32 %v1047, %v494
      %1200 = vrot.lane.b32.xlu0 %v1194, 127
      %v1201 = vpop.permute.xlu0 %1200
      %1202 = vrot.lane.b32.xlu0 %v1195, 127
      %v1203 = vpop.permute.xlu0 %1202
      %1204 = vrot.lane.b32.xlu0 %v1196, 127
      %v1205 = vpop.permute.xlu0 %1204
      %v1206 = vsel %vm512, %v1201, %v1203
      %v1207 = vsel %vm512, %v1203, %v1205
      %v1211 = vsel %vm957, %v1193, 0
      %1213 = vmatpush.msra.mxu0 0.0
      %1214 = vmatpush.msra.mxu0 0.0
      %1215 = vmatpush.msra.mxu0 0.0
      %1216 = vmatpush.msra.mxu0 0.0
      %1217 = vmatpush.msra.mxu0 0.0
      %1218 = vmatpush.msra.mxu0 0.0
      %1219 = vmatpush.msra.mxu0 0.0
      %1220 = vmatpush.msra.mxu0 0.0
      %1221 = vmatpush.msra.mxu0 0.0
      %1222 = vmatpush.msra.mxu0 0.0
      %1223 = vmatpush.msra.mxu0 0.0
      %1224 = vmatpush.msra.mxu0 0.0
      %1225 = vmatpush.msra.mxu0 0.0
      %1226 = vmatpush.msra.mxu0 0.0
      %1227 = vmatpush.msra.mxu0 0.0
      %1228 = vmatpush.msra.mxu0 %v1206
      %1229 = vmatmul.f32.gmra.mxu0 %v1211
      %v1230 = vpop.f32.mrf.mxu0
      %v1231 = vadd.f32 0.0, %v1230
      %1232 = vdwg.mxu0
      %1233 = vmatpush.msra.mxu0 0.0
      %1234 = vmatpush.msra.mxu0 0.0
      %1235 = vmatpush.msra.mxu0 0.0
      %1236 = vmatpush.msra.mxu0 0.0
      %1237 = vmatpush.msra.mxu0 0.0
      %1238 = vmatpush.msra.mxu0 0.0
      %1239 = vmatpush.msra.mxu0 0.0
      %1240 = vmatpush.msra.mxu0 0.0
      %1241 = vmatpush.msra.mxu0 0.0
      %1242 = vmatpush.msra.mxu0 0.0
      %1243 = vmatpush.msra.mxu0 0.0
      %1244 = vmatpush.msra.mxu0 0.0
      %1245 = vmatpush.msra.mxu0 0.0
      %1246 = vmatpush.msra.mxu0 0.0
      %1247 = vmatpush.msra.mxu0 0.0
      %1248 = vmatpush.msra.mxu0 %v1207
      %1249 = vmatmul.f32.gmra.mxu0 %v1211
      %v1250 = vpop.f32.mrf.mxu0
      %v1251 = vadd.f32 0.0, %v1250
      %1252 = vdwg.mxu0
      %v1253 = vadd.f32 %v1190, %v1231
      %v1254 = vadd.f32 %v1191, %v1251
      %s1255 = scalar_lea.vmem %s3, 16
      %v1256 = vld [vmem:[%s1255] sm:$0xff]
      %v1257 = vmul.f32 %v1046, %v569
      %v1258 = vmul.f32 %v1042, %v573
      %v1259 = vmul.f32 %v1047, %v571
      %1263 = vrot.lane.b32.xlu0 %v1257, 126
      %v1264 = vpop.permute.xlu0 %1263
      %1265 = vrot.lane.b32.xlu0 %v1258, 126
      %v1266 = vpop.permute.xlu0 %1265
      %1267 = vrot.lane.b32.xlu0 %v1259, 126
      %v1268 = vpop.permute.xlu0 %1267
      %v1269 = vsel %vm589, %v1264, %v1266
      %v1270 = vsel %vm589, %v1266, %v1268
      %v1274 = vsel %vm957, %v1256, 0
      %1276 = vmatpush.msra.mxu0 0.0
      %1277 = vmatpush.msra.mxu0 0.0
      %1278 = vmatpush.msra.mxu0 0.0
      %1279 = vmatpush.msra.mxu0 0.0
      %1280 = vmatpush.msra.mxu0 0.0
      %1281 = vmatpush.msra.mxu0 0.0
      %1282 = vmatpush.msra.mxu0 0.0
      %1283 = vmatpush.msra.mxu0 0.0
      %1284 = vmatpush.msra.mxu0 0.0
      %1285 = vmatpush.msra.mxu0 0.0
      %1286 = vmatpush.msra.mxu0 0.0
      %1287 = vmatpush.msra.mxu0 0.0
      %1288 = vmatpush.msra.mxu0 0.0
      %1289 = vmatpush.msra.mxu0 0.0
      %1290 = vmatpush.msra.mxu0 0.0
      %1291 = vmatpush.msra.mxu0 %v1269
      %1292 = vmatmul.f32.gmra.mxu0 %v1274
      %v1293 = vpop.f32.mrf.mxu0
      %v1294 = vadd.f32 0.0, %v1293
      %1295 = vdwg.mxu0
      %1296 = vmatpush.msra.mxu0 0.0
      %1297 = vmatpush.msra.mxu0 0.0
      %1298 = vmatpush.msra.mxu0 0.0
      %1299 = vmatpush.msra.mxu0 0.0
      %1300 = vmatpush.msra.mxu0 0.0
      %1301 = vmatpush.msra.mxu0 0.0
      %1302 = vmatpush.msra.mxu0 0.0
      %1303 = vmatpush.msra.mxu0 0.0
      %1304 = vmatpush.msra.mxu0 0.0
      %1305 = vmatpush.msra.mxu0 0.0
      %1306 = vmatpush.msra.mxu0 0.0
      %1307 = vmatpush.msra.mxu0 0.0
      %1308 = vmatpush.msra.mxu0 0.0
      %1309 = vmatpush.msra.mxu0 0.0
      %1310 = vmatpush.msra.mxu0 0.0
      %1311 = vmatpush.msra.mxu0 %v1270
      %1312 = vmatmul.f32.gmra.mxu0 %v1274
      %v1313 = vpop.f32.mrf.mxu0
      %v1314 = vadd.f32 0.0, %v1313
      %1315 = vdwg.mxu0
      %v1316 = vadd.f32 %v1253, %v1294
      %v1317 = vadd.f32 %v1254, %v1314
      %s1318 = scalar_lea.vmem %s3, 24
      %v1319 = vld [vmem:[%s1318] sm:$0xff]
      %v1320 = vmul.f32 %v1046, %v646
      %v1321 = vmul.f32 %v1042, %v650
      %v1322 = vmul.f32 %v1047, %v648
      %1326 = vrot.lane.b32.xlu0 %v1320, 125
      %v1327 = vpop.permute.xlu0 %1326
      %1328 = vrot.lane.b32.xlu0 %v1321, 125
      %v1329 = vpop.permute.xlu0 %1328
      %1330 = vrot.lane.b32.xlu0 %v1322, 125
      %v1331 = vpop.permute.xlu0 %1330
      %v1332 = vsel %vm666, %v1327, %v1329
      %v1333 = vsel %vm666, %v1329, %v1331
      %v1337 = vsel %vm957, %v1319, 0
      %1339 = vmatpush.msra.mxu0 0.0
      %1340 = vmatpush.msra.mxu0 0.0
      %1341 = vmatpush.msra.mxu0 0.0
      %1342 = vmatpush.msra.mxu0 0.0
      %1343 = vmatpush.msra.mxu0 0.0
      %1344 = vmatpush.msra.mxu0 0.0
      %1345 = vmatpush.msra.mxu0 0.0
      %1346 = vmatpush.msra.mxu0 0.0
      %1347 = vmatpush.msra.mxu0 0.0
      %1348 = vmatpush.msra.mxu0 0.0
      %1349 = vmatpush.msra.mxu0 0.0
      %1350 = vmatpush.msra.mxu0 0.0
      %1351 = vmatpush.msra.mxu0 0.0
      %1352 = vmatpush.msra.mxu0 0.0
      %1353 = vmatpush.msra.mxu0 0.0
      %1354 = vmatpush.msra.mxu0 %v1332
      %1355 = vmatmul.f32.gmra.mxu0 %v1337
      %v1356 = vpop.f32.mrf.mxu0
      %v1357 = vadd.f32 0.0, %v1356
      %1358 = vdwg.mxu0
      %1359 = vmatpush.msra.mxu0 0.0
      %1360 = vmatpush.msra.mxu0 0.0
      %1361 = vmatpush.msra.mxu0 0.0
      %1362 = vmatpush.msra.mxu0 0.0
      %1363 = vmatpush.msra.mxu0 0.0
      %1364 = vmatpush.msra.mxu0 0.0
      %1365 = vmatpush.msra.mxu0 0.0
      %1366 = vmatpush.msra.mxu0 0.0
      %1367 = vmatpush.msra.mxu0 0.0
      %1368 = vmatpush.msra.mxu0 0.0
      %1369 = vmatpush.msra.mxu0 0.0
      %1370 = vmatpush.msra.mxu0 0.0
      %1371 = vmatpush.msra.mxu0 0.0
      %1372 = vmatpush.msra.mxu0 0.0
      %1373 = vmatpush.msra.mxu0 0.0
      %1374 = vmatpush.msra.mxu0 %v1333
      %1375 = vmatmul.f32.gmra.mxu0 %v1337
      %v1376 = vpop.f32.mrf.mxu0
      %v1377 = vadd.f32 0.0, %v1376
      %1378 = vdwg.mxu0
      %v1379 = vadd.f32 %v1316, %v1357
      %v1380 = vadd.f32 %v1317, %v1377
      %s1381 = scalar_lea.vmem %s3, 40
      %v1382 = vld [vmem:[%s1381] sm:$0xff]
      %v1383 = vmul.f32 %v1046, %v723
      %v1384 = vmul.f32 %v1042, %v727
      %v1385 = vmul.f32 %v1047, %v725
      %1389 = vrot.lane.b32.xlu0 %v1383, 123
      %v1390 = vpop.permute.xlu0 %1389
      %1391 = vrot.lane.b32.xlu0 %v1384, 123
      %v1392 = vpop.permute.xlu0 %1391
      %1393 = vrot.lane.b32.xlu0 %v1385, 123
      %v1394 = vpop.permute.xlu0 %1393
      %v1395 = vsel %vm743, %v1390, %v1392
      %v1396 = vsel %vm743, %v1392, %v1394
      %v1400 = vsel %vm957, %v1382, 0
      %1402 = vmatpush.msra.mxu0 0.0
      %1403 = vmatpush.msra.mxu0 0.0
      %1404 = vmatpush.msra.mxu0 0.0
      %1405 = vmatpush.msra.mxu0 0.0
      %1406 = vmatpush.msra.mxu0 0.0
      %1407 = vmatpush.msra.mxu0 0.0
      %1408 = vmatpush.msra.mxu0 0.0
      %1409 = vmatpush.msra.mxu0 0.0
      %1410 = vmatpush.msra.mxu0 0.0
      %1411 = vmatpush.msra.mxu0 0.0
      %1412 = vmatpush.msra.mxu0 0.0
      %1413 = vmatpush.msra.mxu0 0.0
      %1414 = vmatpush.msra.mxu0 0.0
      %1415 = vmatpush.msra.mxu0 0.0
      %1416 = vmatpush.msra.mxu0 0.0
      %1417 = vmatpush.msra.mxu0 %v1395
      %1418 = vmatmul.f32.gmra.mxu0 %v1400
      %v1419 = vpop.f32.mrf.mxu0
      %v1420 = vadd.f32 0.0, %v1419
      %1421 = vdwg.mxu0
      %1422 = vmatpush.msra.mxu0 0.0
      %1423 = vmatpush.msra.mxu0 0.0
      %1424 = vmatpush.msra.mxu0 0.0
      %1425 = vmatpush.msra.mxu0 0.0
      %1426 = vmatpush.msra.mxu0 0.0
      %1427 = vmatpush.msra.mxu0 0.0
      %1428 = vmatpush.msra.mxu0 0.0
      %1429 = vmatpush.msra.mxu0 0.0
      %1430 = vmatpush.msra.mxu0 0.0
      %1431 = vmatpush.msra.mxu0 0.0
      %1432 = vmatpush.msra.mxu0 0.0
      %1433 = vmatpush.msra.mxu0 0.0
      %1434 = vmatpush.msra.mxu0 0.0
      %1435 = vmatpush.msra.mxu0 0.0
      %1436 = vmatpush.msra.mxu0 0.0
      %1437 = vmatpush.msra.mxu0 %v1396
      %1438 = vmatmul.f32.gmra.mxu0 %v1400
      %v1439 = vpop.f32.mrf.mxu0
      %v1440 = vadd.f32 0.0, %v1439
      %1441 = vdwg.mxu0
      %v1442 = vadd.f32 %v1379, %v1420
      %v1443 = vadd.f32 %v1380, %v1440
      %s1444 = scalar_lea.vmem %s3, 48
      %v1445 = vld [vmem:[%s1444] sm:$0xff]
      %v1446 = vmul.f32 %v1046, %v800
      %v1447 = vmul.f32 %v1042, %v804
      %v1448 = vmul.f32 %v1047, %v802
      %1452 = vrot.lane.b32.xlu0 %v1446, 122
      %v1453 = vpop.permute.xlu0 %1452
      %1454 = vrot.lane.b32.xlu0 %v1447, 122
      %v1455 = vpop.permute.xlu0 %1454
      %1456 = vrot.lane.b32.xlu0 %v1448, 122
      %v1457 = vpop.permute.xlu0 %1456
      %v1458 = vsel %vm820, %v1453, %v1455
      %v1459 = vsel %vm820, %v1455, %v1457
      %v1463 = vsel %vm957, %v1445, 0
      %1465 = vmatpush.msra.mxu0 0.0
      %1466 = vmatpush.msra.mxu0 0.0
      %1467 = vmatpush.msra.mxu0 0.0
      %1468 = vmatpush.msra.mxu0 0.0
      %1469 = vmatpush.msra.mxu0 0.0
      %1470 = vmatpush.msra.mxu0 0.0
      %1471 = vmatpush.msra.mxu0 0.0
      %1472 = vmatpush.msra.mxu0 0.0
      %1473 = vmatpush.msra.mxu0 0.0
      %1474 = vmatpush.msra.mxu0 0.0
      %1475 = vmatpush.msra.mxu0 0.0
      %1476 = vmatpush.msra.mxu0 0.0
      %1477 = vmatpush.msra.mxu0 0.0
      %1478 = vmatpush.msra.mxu0 0.0
      %1479 = vmatpush.msra.mxu0 0.0
      %1480 = vmatpush.msra.mxu0 %v1458
      %1481 = vmatmul.f32.gmra.mxu0 %v1463
      %v1482 = vpop.f32.mrf.mxu0
      %v1483 = vadd.f32 0.0, %v1482
      %1484 = vdwg.mxu0
      %1485 = vmatpush.msra.mxu0 0.0
      %1486 = vmatpush.msra.mxu0 0.0
      %1487 = vmatpush.msra.mxu0 0.0
      %1488 = vmatpush.msra.mxu0 0.0
      %1489 = vmatpush.msra.mxu0 0.0
      %1490 = vmatpush.msra.mxu0 0.0
      %1491 = vmatpush.msra.mxu0 0.0
      %1492 = vmatpush.msra.mxu0 0.0
      %1493 = vmatpush.msra.mxu0 0.0
      %1494 = vmatpush.msra.mxu0 0.0
      %1495 = vmatpush.msra.mxu0 0.0
      %1496 = vmatpush.msra.mxu0 0.0
      %1497 = vmatpush.msra.mxu0 0.0
      %1498 = vmatpush.msra.mxu0 0.0
      %1499 = vmatpush.msra.mxu0 0.0
      %1500 = vmatpush.msra.mxu0 %v1459
      %1501 = vmatmul.f32.gmra.mxu0 %v1463
      %v1502 = vpop.f32.mrf.mxu0
      %v1503 = vadd.f32 0.0, %v1502
      %1504 = vdwg.mxu0
      %v1505 = vadd.f32 %v1442, %v1483
      %v1506 = vadd.f32 %v1443, %v1503
      %s1507 = scalar_lea.vmem %s3, 56
      %v1508 = vld [vmem:[%s1507] sm:$0xff]
      %v1509 = vmul.f32 %v1046, %v877
      %v1510 = vmul.f32 %v1042, %v881
      %v1511 = vmul.f32 %v1047, %v879
      %1515 = vrot.lane.b32.xlu0 %v1509, 121
      %v1516 = vpop.permute.xlu0 %1515
      %1517 = vrot.lane.b32.xlu0 %v1510, 121
      %v1518 = vpop.permute.xlu0 %1517
      %1519 = vrot.lane.b32.xlu0 %v1511, 121
      %v1520 = vpop.permute.xlu0 %1519
      %v1521 = vsel %vm897, %v1516, %v1518
      %v1522 = vsel %vm897, %v1518, %v1520
      %v1526 = vsel %vm957, %v1508, 0
      %1528 = vmatpush.msra.mxu0 0.0
      %1529 = vmatpush.msra.mxu0 0.0
      %1530 = vmatpush.msra.mxu0 0.0
      %1531 = vmatpush.msra.mxu0 0.0
      %1532 = vmatpush.msra.mxu0 0.0
      %1533 = vmatpush.msra.mxu0 0.0
      %1534 = vmatpush.msra.mxu0 0.0
      %1535 = vmatpush.msra.mxu0 0.0
      %1536 = vmatpush.msra.mxu0 0.0
      %1537 = vmatpush.msra.mxu0 0.0
      %1538 = vmatpush.msra.mxu0 0.0
      %1539 = vmatpush.msra.mxu0 0.0
      %1540 = vmatpush.msra.mxu0 0.0
      %1541 = vmatpush.msra.mxu0 0.0
      %1542 = vmatpush.msra.mxu0 0.0
      %1543 = vmatpush.msra.mxu0 %v1521
      %1544 = vmatmul.f32.gmra.mxu0 %v1526
      %v1545 = vpop.f32.mrf.mxu0
      %v1546 = vadd.f32 0.0, %v1545
      %1547 = vdwg.mxu0
      %1548 = vmatpush.msra.mxu0 0.0
      %1549 = vmatpush.msra.mxu0 0.0
      %1550 = vmatpush.msra.mxu0 0.0
      %1551 = vmatpush.msra.mxu0 0.0
      %1552 = vmatpush.msra.mxu0 0.0
      %1553 = vmatpush.msra.mxu0 0.0
      %1554 = vmatpush.msra.mxu0 0.0
      %1555 = vmatpush.msra.mxu0 0.0
      %1556 = vmatpush.msra.mxu0 0.0
      %1557 = vmatpush.msra.mxu0 0.0
      %1558 = vmatpush.msra.mxu0 0.0
      %1559 = vmatpush.msra.mxu0 0.0
      %1560 = vmatpush.msra.mxu0 0.0
      %1561 = vmatpush.msra.mxu0 0.0
      %1562 = vmatpush.msra.mxu0 0.0
      %1563 = vmatpush.msra.mxu0 %v1522
      %1564 = vmatmul.f32.gmra.mxu0 %v1526
      %v1565 = vpop.f32.mrf.mxu0
      %v1566 = vadd.f32 0.0, %v1565
      %1567 = vdwg.mxu0
      %v1568 = vadd.f32 %v1505, %v1546
      %v1569 = vadd.f32 %v1506, %v1566
      %s1570 = scalar_lea.vmem %s3, 64
      %v1571 = vld [vmem:[%s1570] sm:$0xff]
      %v1572 = vmul.f32 %v1046, %v954
      %v1573 = vmul.f32 %v1042, %v958
      %v1574 = vmul.f32 %v1047, %v956
      %1578 = vrot.lane.b32.xlu0 %v1572, 120
      %v1579 = vpop.permute.xlu0 %1578
      %1580 = vrot.lane.b32.xlu0 %v1573, 120
      %v1581 = vpop.permute.xlu0 %1580
      %1582 = vrot.lane.b32.xlu0 %v1574, 120
      %v1583 = vpop.permute.xlu0 %1582
      %v1584 = vsel %vm974, %v1579, %v1581
      %v1585 = vsel %vm974, %v1581, %v1583
      %v1589 = vsel %vm957, %v1571, 0
      %1591 = vmatpush.msra.mxu0 0.0
      %1592 = vmatpush.msra.mxu0 0.0
      %1593 = vmatpush.msra.mxu0 0.0
      %1594 = vmatpush.msra.mxu0 0.0
      %1595 = vmatpush.msra.mxu0 0.0
      %1596 = vmatpush.msra.mxu0 0.0
      %1597 = vmatpush.msra.mxu0 0.0
      %1598 = vmatpush.msra.mxu0 0.0
      %1599 = vmatpush.msra.mxu0 0.0
      %1600 = vmatpush.msra.mxu0 0.0
      %1601 = vmatpush.msra.mxu0 0.0
      %1602 = vmatpush.msra.mxu0 0.0
      %1603 = vmatpush.msra.mxu0 0.0
      %1604 = vmatpush.msra.mxu0 0.0
      %1605 = vmatpush.msra.mxu0 0.0
      %1606 = vmatpush.msra.mxu0 %v1584
      %1607 = vmatmul.f32.gmra.mxu0 %v1589
      %v1608 = vpop.f32.mrf.mxu0
      %v1609 = vadd.f32 0.0, %v1608
      %1610 = vdwg.mxu0
      %1611 = vmatpush.msra.mxu0 0.0
      %1612 = vmatpush.msra.mxu0 0.0
      %1613 = vmatpush.msra.mxu0 0.0
      %1614 = vmatpush.msra.mxu0 0.0
      %1615 = vmatpush.msra.mxu0 0.0
      %1616 = vmatpush.msra.mxu0 0.0
      %1617 = vmatpush.msra.mxu0 0.0
      %1618 = vmatpush.msra.mxu0 0.0
      %1619 = vmatpush.msra.mxu0 0.0
      %1620 = vmatpush.msra.mxu0 0.0
      %1621 = vmatpush.msra.mxu0 0.0
      %1622 = vmatpush.msra.mxu0 0.0
      %1623 = vmatpush.msra.mxu0 0.0
      %1624 = vmatpush.msra.mxu0 0.0
      %1625 = vmatpush.msra.mxu0 0.0
      %1626 = vmatpush.msra.mxu0 %v1585
      %1627 = vmatmul.f32.gmra.mxu0 %v1589
      %v1628 = vpop.f32.mrf.mxu0
      %v1629 = vadd.f32 0.0, %v1628
      %1630 = vdwg.mxu0
      %v1631 = vadd.f32 %v1568, %v1609
      %v1632 = vadd.f32 %v1569, %v1629
      %v1633 = vld [vmem:[%s5] sm:$0xff]
      %1635 = vset.pattern.permute.xlu0 0
      %1636 = vperm.xlu0 %1635, %v1633
      %v1637 = vpop.permute.xlu0 %1636
      %v1639 = vadd.f32 %v1631, %v1637
      %v1640 = vadd.f32 %v1632, %v1637
      %v1641 = vmax.f32 %v1639, 0.0
      %v1642 = vmax.f32 %v1640, 0.0
      %1643 = vst [vmem:[%s289] sm:$0xff] %v1641
      %1644 = vst [vmem:[%s289 + $0x8] sm:$0xff] %v1642
      %s1645 = smul.u32 2, %s22
      %p1646 = scmp.lt.s32.totalorder %s21, 1
      %s1647 = scalar_select %p1646, %s21, 1
      %p1648 = scmp.lt.s32.totalorder %s1645, 1
      %s1649 = scalar_select %p1648, %s1645, 1
      %s1650 = smul.addr %s1647, 2
      %s1651 = sadd.s32 %s1649, %s1650
      %s1652 = smul.addr %s1651, 8
      %s1653 = scalar_lea.vmem %s6, %s1652
      // Predicated region
      $region45: #{_lambda_.1} parent=43 // pred_check
        %p1654 = pneg %p182
      $region46: #{_lambda_.1} parent=43 // pred_check_branch
        %1656 = sbr.rel (%p1654) target = $region48
      $region47: #{_lambda_.1} parent=43 // pred_region
        %s1657 = smul.u32 2, %s22
      $region48: #{_lambda_.1} parent=43 // pred_fallthru
        _
    $region44: #{_lambda_.1} parent=5 // pred_fallthru
      _
    %p1658 = scmp.le.s32.totalorder 2, %s12
    // Predicated region
    $region49: #{_lambda_.1} parent=5 // pred_check
      %p1659 = pneg %p1658
    $region50: #{_lambda_.1} parent=5 // pred_check_branch
      %1661 = sbr.rel (%p1659) target = $region52
    $region51: #{_lambda_.1} parent=5 // pred_region
      %s1662 = ssub.s32 %s12, 2
      // Predicated region
      $region53: #{_lambda_.1} parent=51 // pred_check
        %p1663 = pneg %p188
      $region54: #{_lambda_.1} parent=51 // pred_check_branch
        %1665 = sbr.rel (%p1663) target = $region56
      $region55: #{_lambda_.1} parent=51 // pred_region
        %s1666 = smul.u32 2, %s24
        %p1667 = scmp.lt.s32.totalorder %s23, 1
        %s1668 = scalar_select %p1667, %s23, 1
        %p1669 = scmp.lt.s32.totalorder %s1666, 1
        %s1670 = scalar_select %p1669, %s1666, 1
        %s1671 = smul.addr %s1668, 2
        %s1672 = sadd.s32 %s1670, %s1671
        %s1673 = smul.addr %s1672, 8
        %s1674 = scalar_lea.vmem %s6, %s1673
      $region56: #{_lambda_.1} parent=51 // pred_fallthru
        _
    $region52: #{_lambda_.1} parent=5 // pred_fallthru
      _
  $region6: #{_lambda_.1} parent=0 // loop_footer
    %s16 = sadd.s32 1, %s12
  $region7: #{_lambda_.1} parent=0 // loop_footer_branch
    %11 = sbr.rel target = $region3
  $region8: #{_lambda_.1} parent=0 // loop_exit
    _

</llo_original>
